<compile_context>
chip_gen: v5e
topology: v5e:2x2
jax: 0.10.0
libtpu: 0.0.40
codegen_flags: <defaults>
</compile_context>

<pallas_src>
import functools

import jax
import jax.numpy as jnp
from jax.experimental import pallas as pl
from jax.experimental.pallas import tpu as pltpu

_LANE = 128


def _round_up(x, m):
    return (x + m - 1) // m * m


def _decoder_block_kernel(x_ref, mask_ref, w1_ref, b1_ref, wm_ref, bm_ref,
                          wl_ref, bl_ref, o_ref, act_ref, *, H, W,
                          num_repeats):
    """Whole _DecoderBlock for one image; activations never leave VMEM.

    x_ref   : (1, Cin, Lpad)  bf16  zero-padded image, flat row stride W+2
    mask_ref: (1, H*(W+2))    f32   1.0 on real pixels, 0.0 on stride padding
    w*_ref  : (9, Cout, Cin)  bf16  per-tap conv weights (BN folded)
    b*_ref  : (Cout, 1)       f32   folded bias
    o_ref   : (1, Cout, H*W)  f32   compact lane-dense output
    act_ref : (Cmid, Lpad)    bf16  activation scratch, same flat layout as x
    """
    Wp = W + 2
    nspan = H * Wp                               # matmul N (one col per (y, x<Wp))
    store_off = _round_up(Wp + 1, _LANE)         # lane-aligned pos of pixel (0,0)
    base = store_off - (Wp + 1)                  # shift of the padded plane
    cmid, lpad = act_ref.shape

    # Zero only the halo strips (top pad row + bottom pad row/tail); interior
    # and left/right halo columns are rewritten by every layer's masked store.
    # Redone each grid step so the kernel stays megacore-safe.
    act_ref[:, :store_off] = jnp.zeros((cmid, store_off), act_ref.dtype)
    act_ref[:, store_off + nspan:] = jnp.zeros(
        (cmid, lpad - store_off - nspan), act_ref.dtype)

    mask = mask_ref[...]                         # (1, nspan) f32

    def conv3x3(tap, w_ref, b_ref):
        """9 per-tap MXU dots, f32 accumulation, folded-BN bias + ReLU."""
        c_out = w_ref.shape[1]
        acc = jnp.zeros((c_out, nspan), jnp.float32)
        for t in range(9):
            ky, kx = divmod(t, 3)
            acc = acc + jnp.dot(w_ref[t], tap(base + ky * Wp + kx),
                                preferred_element_type=jnp.float32)
        return jnp.maximum(acc + b_ref[...], 0.0)          # (c_out, nspan) f32

    def x_tap(off):                                        # contiguous lane slice
        return x_ref[0, :, off:off + nspan]

    def act_tap(off):
        return act_ref[:, off:off + nspan]

    def store_act(val_f32):
        # Masked (stride-padding) columns land exactly on the left/right halo
        # columns of the next layer's padded plane -> halo stays zero.
        act_ref[:, store_off:store_off + nspan] = (
            (val_f32 * mask).astype(act_ref.dtype))

    # first conv: Cin -> Cmid
    store_act(conv3x3(x_tap, w1_ref, b1_ref))

    # (num_conv_layers - 2) middle convs; parameters are shared.
    if num_repeats > 0:
        if num_repeats <= 4:
            for _ in range(num_repeats):
                store_act(conv3x3(act_tap, wm_ref, bm_ref))
        else:
            @pl.loop(0, num_repeats)
            def _middle(_i):
                store_act(conv3x3(act_tap, wm_ref, bm_ref))

    # last conv: Cmid -> Cout, compacted to row stride W on the way out.
    y_last = conv3x3(act_tap, wl_ref, bl_ref)              # (Cout, nspan) f32
    for y in range(H):
        o_ref[0, :, y * W:(y + 1) * W] = y_last[:, y * Wp:y * Wp + W]


def _fold_bn(layer, eps=1e-5):
    """Fold eval-mode BN into the conv.

    Returns (w9 (9, Cout, Cin) bf16, b (Cout, 1) f32).
    """
    w, cb, gamma, beta, mean, var = layer                  # w: (Cout, Cin, 3, 3)
    s = gamma / jnp.sqrt(var + eps)                        # (Cout,)
    w9 = jnp.transpose(w * s[:, None, None, None], (2, 3, 0, 1))
    w9 = w9.reshape(9, w.shape[0], w.shape[1]).astype(jnp.bfloat16)
    b = (cb * s + beta - mean * s).reshape(-1, 1).astype(jnp.float32)
    return w9, b


def decoder_block_pallas(x_nchw, p_first, p_middle, p_last, num_repeats):
    """x_nchw: (N, Cin, H, W) f32. Returns (N, Cout, H, W) f32."""
    N, Cin, H, W = x_nchw.shape
    Wp = W + 2
    NSPAN = H * Wp
    STORE_OFF = _round_up(Wp + 1, _LANE)
    BASE = STORE_OFF - (Wp + 1)
    # Largest tap read ends at STORE_OFF + NSPAN + Wp + 1; round lanes up.
    LPAD = _round_up(STORE_OFF + NSPAN + Wp + 1, _LANE)

    w1, b1 = _fold_bn(p_first)
    wm, bm = _fold_bn(p_middle)
    wl, bl = _fold_bn(p_last)
    Cmid = w1.shape[1]
    Cout = wl.shape[1]

    # Spatial zero-pad by 1 (conv halo), flatten HW into lanes with row stride
    # Wp, shift by BASE so pixel (0,0) is 128-lane aligned, cast to bf16.
    xp = jnp.pad(x_nchw, ((0, 0), (0, 0), (1, 1), (1, 1)))
    xp = xp.reshape(N, Cin, (H + 2) * Wp)
    xp = jnp.pad(xp, ((0, 0), (0, 0), (BASE, LPAD - BASE - (H + 2) * Wp)))
    xp = xp.astype(jnp.bfloat16)

    # 1.0 on real pixels (x < W within each stride-Wp row), 0.0 on the two
    # stride-padding columns.
    mask = (jnp.arange(NSPAN) % Wp < W).astype(jnp.float32).reshape(1, NSPAN)

    kernel = functools.partial(_decoder_block_kernel, H=H, W=W,
                               num_repeats=num_repeats)

    out = pl.pallas_call(
        kernel,
        out_shape=jax.ShapeDtypeStruct((N, Cout, H * W), x_nchw.dtype),
        grid_spec=pltpu.PrefetchScalarGridSpec(
            num_scalar_prefetch=0,
            grid=(N,),
            in_specs=[
                pl.BlockSpec((1, Cin, LPAD), lambda n: (n, 0, 0)),
                pl.BlockSpec((1, NSPAN), lambda n: (0, 0)),
                pl.BlockSpec(w1.shape, lambda n: (0, 0, 0)),
                pl.BlockSpec(b1.shape, lambda n: (0, 0)),
                pl.BlockSpec(wm.shape, lambda n: (0, 0, 0)),
                pl.BlockSpec(bm.shape, lambda n: (0, 0)),
                pl.BlockSpec(wl.shape, lambda n: (0, 0, 0)),
                pl.BlockSpec(bl.shape, lambda n: (0, 0)),
            ],
            out_specs=pl.BlockSpec((1, Cout, H * W), lambda n: (n, 0, 0)),
            scratch_shapes=[pltpu.VMEM((Cmid, LPAD), jnp.bfloat16)],
        ),
        compiler_params=pltpu.CompilerParams(
            dimension_semantics=("parallel",),
        ),
    )(xp, mask, w1, b1, wm, bm, wl, bl)

    return out.reshape(N, Cout, H, W)


def _make_layer_params(key, c_in, c_out):
    """Deterministic synthetic params for one Conv2d + BatchNorm2d layer."""
    k1, k2, k3, k4, k5, k6 = jax.random.split(key, 6)
    bound = float(c_in * 9) ** -0.5
    w = jax.random.uniform(k1, (c_out, c_in, 3, 3), jnp.float32, -bound, bound)
    cb = jax.random.uniform(k2, (c_out,), jnp.float32, -bound, bound)
    gamma = 1.0 + 0.1 * jax.random.normal(k3, (c_out,), jnp.float32)
    beta = 0.1 * jax.random.normal(k4, (c_out,), jnp.float32)
    mean = 0.1 * jax.random.normal(k5, (c_out,), jnp.float32)
    var = jnp.abs(jax.random.normal(k6, (c_out,), jnp.float32)) + 0.5
    return (w, cb, gamma, beta, mean, var)


def decoder_block_init(key, in_channels, out_channels, num_conv_layers):
    mid = int(in_channels / 2)
    k0, k1, k2 = jax.random.split(key, 3)
    return {
        "first": _make_layer_params(k0, in_channels, mid),
        "middle": _make_layer_params(k1, mid, mid),    # shared by all repeats
        "last": _make_layer_params(k2, mid, out_channels),
        "num_conv_layers": num_conv_layers,
    }


@functools.partial(jax.jit, static_argnames=("num_repeats",))
def _decoder_block_apply(x_nchw, p_first, p_middle, p_last, num_repeats):
    return decoder_block_pallas(x_nchw, p_first, p_middle, p_last, num_repeats)


def decoder_block_forward(params, x_nchw):
    reps = max(params["num_conv_layers"] - 2, 0)
    return _decoder_block_apply(x_nchw, params["first"], params["middle"],
                                params["last"], num_repeats=reps)


def _reference_forward(params, x, eps=1e-5):
    """Pure-JAX f32 eval-mode reference: Conv2d + BatchNorm2d + ReLU stack."""
    def layer(z, p):
        w, cb, gamma, beta, mean, var = p
        z = jax.lax.conv_general_dilated(
            z, w, window_strides=(1, 1), padding=((1, 1), (1, 1)),
            dimension_numbers=("NCHW", "OIHW", "NCHW"),
            precision=jax.lax.Precision.HIGHEST)
        z = z + cb[None, :, None, None]
        z = (z - mean[None, :, None, None]) * (
            gamma[None, :, None, None]
            / jnp.sqrt(var[None, :, None, None] + eps))
        z = z + beta[None, :, None, None]
        return jnp.maximum(z, 0.0)

    z = layer(x, params["first"])
    for _ in range(max(params["num_conv_layers"] - 2, 0)):
        z = layer(z, params["middle"])
    return layer(z, params["last"])


if __name__ == "__main__":
    key = jax.random.PRNGKey(0)
    k_param, k_x = jax.random.split(key)

    in_channels, out_channels, num_conv_layers = 16, 8, 3
    N, H, W = 2, 16, 16

    params = decoder_block_init(k_param, in_channels, out_channels,
                                num_conv_layers)
    x = jax.random.normal(k_x, (N, in_channels, H, W), jnp.float32)

    y = jax.block_until_ready(decoder_block_forward(params, x))
    assert y.shape == (N, out_channels, H, W), y.shape
    assert bool(jnp.all(y >= 0.0))                      # ReLU output

    # bf16 weights/activations with f32 accumulation -> expect ~1e-2 relative
    # deviation from the f32 reference.
    y_ref = _reference_forward(params, x)
    assert bool(jnp.allclose(y, y_ref, rtol=5e-2, atol=5e-2)), (
        float(jnp.max(jnp.abs(y - y_ref))))

    print("KERNEL_OK")
</pallas_src>

<mosaic_0001>
module attributes {stable_mosaic.version = 11 : i64} {
  func.func @_decoder_block_kernel(%arg0: i32, %arg1: memref<1x16x512xbf16, #tpu.memory_space<vmem>>, %arg2: memref<1x288xf32, #tpu.memory_space<vmem>>, %arg3: memref<9x8x16xbf16, #tpu.memory_space<vmem>>, %arg4: memref<8x1xf32, #tpu.memory_space<vmem>>, %arg5: memref<9x8x8xbf16, #tpu.memory_space<vmem>>, %arg6: memref<8x1xf32, #tpu.memory_space<vmem>>, %arg7: memref<9x8x8xbf16, #tpu.memory_space<vmem>>, %arg8: memref<8x1xf32, #tpu.memory_space<vmem>>, %arg9: memref<1x8x256xf32, #tpu.memory_space<vmem>>, %arg10: memref<8x512xbf16, #tpu.memory_space<vmem>>) attributes {dimension_semantics = [#tpu.dimension_semantics<parallel>], iteration_bounds = array<i64: 2>, scalar_prefetch = 0 : i64, scratch_operands = 1 : i64, tpu.core_type = #tpu.core_type<tc>, window_params = [{transform_indices = @transform_0, window_bounds = array<i64: 1, 16, 512>}, {pipeline_mode = #tpu.pipeline_mode<synchronous>, transform_indices = @transform_1, window_bounds = array<i64: 1, 288>}, {pipeline_mode = #tpu.pipeline_mode<synchronous>, transform_indices = @transform_2, window_bounds = array<i64: 9, 8, 16>}, {pipeline_mode = #tpu.pipeline_mode<synchronous>, transform_indices = @transform_3, window_bounds = array<i64: 8, 1>}, {pipeline_mode = #tpu.pipeline_mode<synchronous>, transform_indices = @transform_4, window_bounds = array<i64: 9, 8, 8>}, {pipeline_mode = #tpu.pipeline_mode<synchronous>, transform_indices = @transform_5, window_bounds = array<i64: 8, 1>}, {pipeline_mode = #tpu.pipeline_mode<synchronous>, transform_indices = @transform_6, window_bounds = array<i64: 9, 8, 8>}, {pipeline_mode = #tpu.pipeline_mode<synchronous>, transform_indices = @transform_7, window_bounds = array<i64: 8, 1>}, {transform_indices = @transform_8, window_bounds = array<i64: 1, 8, 256>}]} {
    %cst = arith.constant 0.000000e+00 : bf16
    %0 = vector.broadcast %cst : bf16 to vector<8x128xbf16>
    %c0 = arith.constant 0 : index
    %c0_0 = arith.constant 0 : index
    %1 = vector.load %arg10[%c0, %c0_0] : memref<8x512xbf16, #tpu.memory_space<vmem>>, vector<8x128xbf16>
    tpu.vector_store %arg10[%c0, %c0_0], %0 {strides = array<i32>} : memref<8x512xbf16, #tpu.memory_space<vmem>>, vector<8x128xbf16>,
    %cst_1 = arith.constant 0.000000e+00 : bf16
    %2 = vector.broadcast %cst_1 : bf16 to vector<8x96xbf16>
    %c0_2 = arith.constant 0 : index
    %c416 = arith.constant 416 : index
    %3 = vector.load %arg10[%c0_2, %c416] : memref<8x512xbf16, #tpu.memory_space<vmem>>, vector<8x96xbf16>
    tpu.vector_store %arg10[%c0_2, %c416], %2 {strides = array<i32>} : memref<8x512xbf16, #tpu.memory_space<vmem>>, vector<8x96xbf16>,
    %c0_3 = arith.constant 0 : index
    %c0_4 = arith.constant 0 : index
    %4 = vector.load %arg2[%c0_3, %c0_4] : memref<1x288xf32, #tpu.memory_space<vmem>>, vector<1x288xf32>
    %cst_5 = arith.constant 0.000000e+00 : f32
    %5 = vector.broadcast %cst_5 : f32 to vector<8x288xf32>
    %c0_6 = arith.constant 0 : index
    %c0_7 = arith.constant 0 : index
    %c0_8 = arith.constant 0 : index
    %6 = vector.load %arg3[%c0_6, %c0_7, %c0_8] : memref<9x8x16xbf16, #tpu.memory_space<vmem>>, vector<1x8x16xbf16>
    %7 = vector.shape_cast %6 : vector<1x8x16xbf16> to vector<8x16xbf16>
    %c0_9 = arith.constant 0 : index
    %c0_10 = arith.constant 0 : index
    %c109 = arith.constant 109 : index
    %8 = vector.load %arg1[%c0_9, %c0_10, %c109] : memref<1x16x512xbf16, #tpu.memory_space<vmem>>, vector<1x16x288xbf16>
    %9 = vector.shape_cast %8 : vector<1x16x288xbf16> to vector<16x288xbf16>
    %cst_11 = arith.constant dense<0.000000e+00> : vector<8x288xf32>
    %10 = tpu.matmul %7, %9, %cst_11 {dimension_numbers = #tpu.dot_dimension_numbers<[1], [0], [0], [1], [0, 0, 1, 1], [], []>} : vector<8x16xbf16>, vector<16x288xbf16>, vector<8x288xf32> -> vector<8x288xf32>
    %11 = arith.addf %5, %10 : vector<8x288xf32>
    %c1 = arith.constant 1 : index
    %c0_12 = arith.constant 0 : index
    %c0_13 = arith.constant 0 : index
    %12 = vector.load %arg3[%c1, %c0_12, %c0_13] : memref<9x8x16xbf16, #tpu.memory_space<vmem>>, vector<1x8x16xbf16>
    %13 = vector.shape_cast %12 : vector<1x8x16xbf16> to vector<8x16xbf16>
    %c0_14 = arith.constant 0 : index
    %c0_15 = arith.constant 0 : index
    %c110 = arith.constant 110 : index
    %14 = vector.load %arg1[%c0_14, %c0_15, %c110] : memref<1x16x512xbf16, #tpu.memory_space<vmem>>, vector<1x16x288xbf16>
    %15 = vector.shape_cast %14 : vector<1x16x288xbf16> to vector<16x288xbf16>
    %cst_16 = arith.constant dense<0.000000e+00> : vector<8x288xf32>
    %16 = tpu.matmul %13, %15, %cst_16 {dimension_numbers = #tpu.dot_dimension_numbers<[1], [0], [0], [1], [0, 0, 1, 1], [], []>} : vector<8x16xbf16>, vector<16x288xbf16>, vector<8x288xf32> -> vector<8x288xf32>
    %17 = arith.addf %11, %16 : vector<8x288xf32>
    %c2 = arith.constant 2 : index
    %c0_17 = arith.constant 0 : index
    %c0_18 = arith.constant 0 : index
    %18 = vector.load %arg3[%c2, %c0_17, %c0_18] : memref<9x8x16xbf16, #tpu.memory_space<vmem>>, vector<1x8x16xbf16>
    %19 = vector.shape_cast %18 : vector<1x8x16xbf16> to vector<8x16xbf16>
    %c0_19 = arith.constant 0 : index
    %c0_20 = arith.constant 0 : index
    %c111 = arith.constant 111 : index
    %20 = vector.load %arg1[%c0_19, %c0_20, %c111] : memref<1x16x512xbf16, #tpu.memory_space<vmem>>, vector<1x16x288xbf16>
    %21 = vector.shape_cast %20 : vector<1x16x288xbf16> to vector<16x288xbf16>
    %cst_21 = arith.constant dense<0.000000e+00> : vector<8x288xf32>
    %22 = tpu.matmul %19, %21, %cst_21 {dimension_numbers = #tpu.dot_dimension_numbers<[1], [0], [0], [1], [0, 0, 1, 1], [], []>} : vector<8x16xbf16>, vector<16x288xbf16>, vector<8x288xf32> -> vector<8x288xf32>
    %23 = arith.addf %17, %22 : vector<8x288xf32>
    %c3 = arith.constant 3 : index
    %c0_22 = arith.constant 0 : index
    %c0_23 = arith.constant 0 : index
    %24 = vector.load %arg3[%c3, %c0_22, %c0_23] : memref<9x8x16xbf16, #tpu.memory_space<vmem>>, vector<1x8x16xbf16>
    %25 = vector.shape_cast %24 : vector<1x8x16xbf16> to vector<8x16xbf16>
    %c0_24 = arith.constant 0 : index
    %c0_25 = arith.constant 0 : index
    %c127 = arith.constant 127 : index
    %26 = vector.load %arg1[%c0_24, %c0_25, %c127] : memref<1x16x512xbf16, #tpu.memory_space<vmem>>, vector<1x16x288xbf16>
    %27 = vector.shape_cast %26 : vector<1x16x288xbf16> to vector<16x288xbf16>
    %cst_26 = arith.constant dense<0.000000e+00> : vector<8x288xf32>
    %28 = tpu.matmul %25, %27, %cst_26 {dimension_numbers = #tpu.dot_dimension_numbers<[1], [0], [0], [1], [0, 0, 1, 1], [], []>} : vector<8x16xbf16>, vector<16x288xbf16>, vector<8x288xf32> -> vector<8x288xf32>
    %29 = arith.addf %23, %28 : vector<8x288xf32>
    %c4 = arith.constant 4 : index
    %c0_27 = arith.constant 0 : index
    %c0_28 = arith.constant 0 : index
    %30 = vector.load %arg3[%c4, %c0_27, %c0_28] : memref<9x8x16xbf16, #tpu.memory_space<vmem>>, vector<1x8x16xbf16>
    %31 = vector.shape_cast %30 : vector<1x8x16xbf16> to vector<8x16xbf16>
    %c0_29 = arith.constant 0 : index
    %c0_30 = arith.constant 0 : index
    %c128 = arith.constant 128 : index
    %32 = vector.load %arg1[%c0_29, %c0_30, %c128] : memref<1x16x512xbf16, #tpu.memory_space<vmem>>, vector<1x16x288xbf16>
    %33 = vector.shape_cast %32 : vector<1x16x288xbf16> to vector<16x288xbf16>
    %cst_31 = arith.constant dense<0.000000e+00> : vector<8x288xf32>
    %34 = tpu.matmul %31, %33, %cst_31 {dimension_numbers = #tpu.dot_dimension_numbers<[1], [0], [0], [1], [0, 0, 1, 1], [], []>} : vector<8x16xbf16>, vector<16x288xbf16>, vector<8x288xf32> -> vector<8x288xf32>
    %35 = arith.addf %29, %34 : vector<8x288xf32>
    %c5 = arith.constant 5 : index
    %c0_32 = arith.constant 0 : index
    %c0_33 = arith.constant 0 : index
    %36 = vector.load %arg3[%c5, %c0_32, %c0_33] : memref<9x8x16xbf16, #tpu.memory_space<vmem>>, vector<1x8x16xbf16>
    %37 = vector.shape_cast %36 : vector<1x8x16xbf16> to vector<8x16xbf16>
    %c0_34 = arith.constant 0 : index
    %c0_35 = arith.constant 0 : index
    %c129 = arith.constant 129 : index
    %38 = vector.load %arg1[%c0_34, %c0_35, %c129] : memref<1x16x512xbf16, #tpu.memory_space<vmem>>, vector<1x16x288xbf16>
    %39 = vector.shape_cast %38 : vector<1x16x288xbf16> to vector<16x288xbf16>
    %cst_36 = arith.constant dense<0.000000e+00> : vector<8x288xf32>
    %40 = tpu.matmul %37, %39, %cst_36 {dimension_numbers = #tpu.dot_dimension_numbers<[1], [0], [0], [1], [0, 0, 1, 1], [], []>} : vector<8x16xbf16>, vector<16x288xbf16>, vector<8x288xf32> -> vector<8x288xf32>
    %41 = arith.addf %35, %40 : vector<8x288xf32>
    %c6 = arith.constant 6 : index
    %c0_37 = arith.constant 0 : index
    %c0_38 = arith.constant 0 : index
    %42 = vector.load %arg3[%c6, %c0_37, %c0_38] : memref<9x8x16xbf16, #tpu.memory_space<vmem>>, vector<1x8x16xbf16>
    %43 = vector.shape_cast %42 : vector<1x8x16xbf16> to vector<8x16xbf16>
    %c0_39 = arith.constant 0 : index
    %c0_40 = arith.constant 0 : index
    %c145 = arith.constant 145 : index
    %44 = vector.load %arg1[%c0_39, %c0_40, %c145] : memref<1x16x512xbf16, #tpu.memory_space<vmem>>, vector<1x16x288xbf16>
    %45 = vector.shape_cast %44 : vector<1x16x288xbf16> to vector<16x288xbf16>
    %cst_41 = arith.constant dense<0.000000e+00> : vector<8x288xf32>
    %46 = tpu.matmul %43, %45, %cst_41 {dimension_numbers = #tpu.dot_dimension_numbers<[1], [0], [0], [1], [0, 0, 1, 1], [], []>} : vector<8x16xbf16>, vector<16x288xbf16>, vector<8x288xf32> -> vector<8x288xf32>
    %47 = arith.addf %41, %46 : vector<8x288xf32>
    %c7 = arith.constant 7 : index
    %c0_42 = arith.constant 0 : index
    %c0_43 = arith.constant 0 : index
    %48 = vector.load %arg3[%c7, %c0_42, %c0_43] : memref<9x8x16xbf16, #tpu.memory_space<vmem>>, vector<1x8x16xbf16>
    %49 = vector.shape_cast %48 : vector<1x8x16xbf16> to vector<8x16xbf16>
    %c0_44 = arith.constant 0 : index
    %c0_45 = arith.constant 0 : index
    %c146 = arith.constant 146 : index
    %50 = vector.load %arg1[%c0_44, %c0_45, %c146] : memref<1x16x512xbf16, #tpu.memory_space<vmem>>, vector<1x16x288xbf16>
    %51 = vector.shape_cast %50 : vector<1x16x288xbf16> to vector<16x288xbf16>
    %cst_46 = arith.constant dense<0.000000e+00> : vector<8x288xf32>
    %52 = tpu.matmul %49, %51, %cst_46 {dimension_numbers = #tpu.dot_dimension_numbers<[1], [0], [0], [1], [0, 0, 1, 1], [], []>} : vector<8x16xbf16>, vector<16x288xbf16>, vector<8x288xf32> -> vector<8x288xf32>
    %53 = arith.addf %47, %52 : vector<8x288xf32>
    %c8 = arith.constant 8 : index
    %c0_47 = arith.constant 0 : index
    %c0_48 = arith.constant 0 : index
    %54 = vector.load %arg3[%c8, %c0_47, %c0_48] : memref<9x8x16xbf16, #tpu.memory_space<vmem>>, vector<1x8x16xbf16>
    %55 = vector.shape_cast %54 : vector<1x8x16xbf16> to vector<8x16xbf16>
    %c0_49 = arith.constant 0 : index
    %c0_50 = arith.constant 0 : index
    %c147 = arith.constant 147 : index
    %56 = vector.load %arg1[%c0_49, %c0_50, %c147] : memref<1x16x512xbf16, #tpu.memory_space<vmem>>, vector<1x16x288xbf16>
    %57 = vector.shape_cast %56 : vector<1x16x288xbf16> to vector<16x288xbf16>
    %cst_51 = arith.constant dense<0.000000e+00> : vector<8x288xf32>
    %58 = tpu.matmul %55, %57, %cst_51 {dimension_numbers = #tpu.dot_dimension_numbers<[1], [0], [0], [1], [0, 0, 1, 1], [], []>} : vector<8x16xbf16>, vector<16x288xbf16>, vector<8x288xf32> -> vector<8x288xf32>
    %59 = arith.addf %53, %58 : vector<8x288xf32>
    %c0_52 = arith.constant 0 : index
    %c0_53 = arith.constant 0 : index
    %60 = vector.load %arg4[%c0_52, %c0_53] : memref<8x1xf32, #tpu.memory_space<vmem>>, vector<8x1xf32>
    %61 = vector.broadcast %60 : vector<8x1xf32> to vector<8x288xf32>
    %62 = arith.addf %59, %61 : vector<8x288xf32>
    %cst_54 = arith.constant 0.000000e+00 : f32
    %63 = vector.broadcast %cst_54 : f32 to vector<8x288xf32>
    %64 = arith.maximumf %62, %63 : vector<8x288xf32>
    %65 = vector.broadcast %4 : vector<1x288xf32> to vector<8x288xf32>
    %66 = arith.mulf %64, %65 : vector<8x288xf32>
    %67 = arith.truncf %66 : vector<8x288xf32> to vector<8x288xbf16>
    %c0_55 = arith.constant 0 : index
    %c128_56 = arith.constant 128 : index
    %68 = vector.load %arg10[%c0_55, %c128_56] : memref<8x512xbf16, #tpu.memory_space<vmem>>, vector<8x288xbf16>
    tpu.vector_store %arg10[%c0_55, %c128_56], %67 {strides = array<i32>} : memref<8x512xbf16, #tpu.memory_space<vmem>>, vector<8x288xbf16>,
    %cst_57 = arith.constant 0.000000e+00 : f32
    %69 = vector.broadcast %cst_57 : f32 to vector<8x288xf32>
    %c0_58 = arith.constant 0 : index
    %c0_59 = arith.constant 0 : index
    %c0_60 = arith.constant 0 : index
    %70 = vector.load %arg5[%c0_58, %c0_59, %c0_60] : memref<9x8x8xbf16, #tpu.memory_space<vmem>>, vector<1x8x8xbf16>
    %71 = vector.shape_cast %70 : vector<1x8x8xbf16> to vector<8x8xbf16>
    %c0_61 = arith.constant 0 : index
    %c109_62 = arith.constant 109 : index
    %72 = vector.load %arg10[%c0_61, %c109_62] : memref<8x512xbf16, #tpu.memory_space<vmem>>, vector<8x288xbf16>
    %cst_63 = arith.constant dense<0.000000e+00> : vector<8x288xf32>
    %73 = tpu.matmul %71, %72, %cst_63 {dimension_numbers = #tpu.dot_dimension_numbers<[1], [0], [0], [1], [0, 0, 1, 1], [], []>} : vector<8x8xbf16>, vector<8x288xbf16>, vector<8x288xf32> -> vector<8x288xf32>
    %74 = arith.addf %69, %73 : vector<8x288xf32>
    %c1_64 = arith.constant 1 : index
    %c0_65 = arith.constant 0 : index
    %c0_66 = arith.constant 0 : index
    %75 = vector.load %arg5[%c1_64, %c0_65, %c0_66] : memref<9x8x8xbf16, #tpu.memory_space<vmem>>, vector<1x8x8xbf16>
    %76 = vector.shape_cast %75 : vector<1x8x8xbf16> to vector<8x8xbf16>
    %c0_67 = arith.constant 0 : index
    %c110_68 = arith.constant 110 : index
    %77 = vector.load %arg10[%c0_67, %c110_68] : memref<8x512xbf16, #tpu.memory_space<vmem>>, vector<8x288xbf16>
    %cst_69 = arith.constant dense<0.000000e+00> : vector<8x288xf32>
    %78 = tpu.matmul %76, %77, %cst_69 {dimension_numbers = #tpu.dot_dimension_numbers<[1], [0], [0], [1], [0, 0, 1, 1], [], []>} : vector<8x8xbf16>, vector<8x288xbf16>, vector<8x288xf32> -> vector<8x288xf32>
    %79 = arith.addf %74, %78 : vector<8x288xf32>
    %c2_70 = arith.constant 2 : index
    %c0_71 = arith.constant 0 : index
    %c0_72 = arith.constant 0 : index
    %80 = vector.load %arg5[%c2_70, %c0_71, %c0_72] : memref<9x8x8xbf16, #tpu.memory_space<vmem>>, vector<1x8x8xbf16>
    %81 = vector.shape_cast %80 : vector<1x8x8xbf16> to vector<8x8xbf16>
    %c0_73 = arith.constant 0 : index
    %c111_74 = arith.constant 111 : index
    %82 = vector.load %arg10[%c0_73, %c111_74] : memref<8x512xbf16, #tpu.memory_space<vmem>>, vector<8x288xbf16>
    %cst_75 = arith.constant dense<0.000000e+00> : vector<8x288xf32>
    %83 = tpu.matmul %81, %82, %cst_75 {dimension_numbers = #tpu.dot_dimension_numbers<[1], [0], [0], [1], [0, 0, 1, 1], [], []>} : vector<8x8xbf16>, vector<8x288xbf16>, vector<8x288xf32> -> vector<8x288xf32>
    %84 = arith.addf %79, %83 : vector<8x288xf32>
    %c3_76 = arith.constant 3 : index
    %c0_77 = arith.constant 0 : index
    %c0_78 = arith.constant 0 : index
    %85 = vector.load %arg5[%c3_76, %c0_77, %c0_78] : memref<9x8x8xbf16, #tpu.memory_space<vmem>>, vector<1x8x8xbf16>
    %86 = vector.shape_cast %85 : vector<1x8x8xbf16> to vector<8x8xbf16>
    %c0_79 = arith.constant 0 : index
    %c127_80 = arith.constant 127 : index
    %87 = vector.load %arg10[%c0_79, %c127_80] : memref<8x512xbf16, #tpu.memory_space<vmem>>, vector<8x288xbf16>
    %cst_81 = arith.constant dense<0.000000e+00> : vector<8x288xf32>
    %88 = tpu.matmul %86, %87, %cst_81 {dimension_numbers = #tpu.dot_dimension_numbers<[1], [0], [0], [1], [0, 0, 1, 1], [], []>} : vector<8x8xbf16>, vector<8x288xbf16>, vector<8x288xf32> -> vector<8x288xf32>
    %89 = arith.addf %84, %88 : vector<8x288xf32>
    %c4_82 = arith.constant 4 : index
    %c0_83 = arith.constant 0 : index
    %c0_84 = arith.constant 0 : index
    %90 = vector.load %arg5[%c4_82, %c0_83, %c0_84] : memref<9x8x8xbf16, #tpu.memory_space<vmem>>, vector<1x8x8xbf16>
    %91 = vector.shape_cast %90 : vector<1x8x8xbf16> to vector<8x8xbf16>
    %c0_85 = arith.constant 0 : index
    %c128_86 = arith.constant 128 : index
    %92 = vector.load %arg10[%c0_85, %c128_86] : memref<8x512xbf16, #tpu.memory_space<vmem>>, vector<8x288xbf16>
    %cst_87 = arith.constant dense<0.000000e+00> : vector<8x288xf32>
    %93 = tpu.matmul %91, %92, %cst_87 {dimension_numbers = #tpu.dot_dimension_numbers<[1], [0], [0], [1], [0, 0, 1, 1], [], []>} : vector<8x8xbf16>, vector<8x288xbf16>, vector<8x288xf32> -> vector<8x288xf32>
    %94 = arith.addf %89, %93 : vector<8x288xf32>
    %c5_88 = arith.constant 5 : index
    %c0_89 = arith.constant 0 : index
    %c0_90 = arith.constant 0 : index
    %95 = vector.load %arg5[%c5_88, %c0_89, %c0_90] : memref<9x8x8xbf16, #tpu.memory_space<vmem>>, vector<1x8x8xbf16>
    %96 = vector.shape_cast %95 : vector<1x8x8xbf16> to vector<8x8xbf16>
    %c0_91 = arith.constant 0 : index
    %c129_92 = arith.constant 129 : index
    %97 = vector.load %arg10[%c0_91, %c129_92] : memref<8x512xbf16, #tpu.memory_space<vmem>>, vector<8x288xbf16>
    %cst_93 = arith.constant dense<0.000000e+00> : vector<8x288xf32>
    %98 = tpu.matmul %96, %97, %cst_93 {dimension_numbers = #tpu.dot_dimension_numbers<[1], [0], [0], [1], [0, 0, 1, 1], [], []>} : vector<8x8xbf16>, vector<8x288xbf16>, vector<8x288xf32> -> vector<8x288xf32>
    %99 = arith.addf %94, %98 : vector<8x288xf32>
    %c6_94 = arith.constant 6 : index
    %c0_95 = arith.constant 0 : index
    %c0_96 = arith.constant 0 : index
    %100 = vector.load %arg5[%c6_94, %c0_95, %c0_96] : memref<9x8x8xbf16, #tpu.memory_space<vmem>>, vector<1x8x8xbf16>
    %101 = vector.shape_cast %100 : vector<1x8x8xbf16> to vector<8x8xbf16>
    %c0_97 = arith.constant 0 : index
    %c145_98 = arith.constant 145 : index
    %102 = vector.load %arg10[%c0_97, %c145_98] : memref<8x512xbf16, #tpu.memory_space<vmem>>, vector<8x288xbf16>
    %cst_99 = arith.constant dense<0.000000e+00> : vector<8x288xf32>
    %103 = tpu.matmul %101, %102, %cst_99 {dimension_numbers = #tpu.dot_dimension_numbers<[1], [0], [0], [1], [0, 0, 1, 1], [], []>} : vector<8x8xbf16>, vector<8x288xbf16>, vector<8x288xf32> -> vector<8x288xf32>
    %104 = arith.addf %99, %103 : vector<8x288xf32>
    %c7_100 = arith.constant 7 : index
    %c0_101 = arith.constant 0 : index
    %c0_102 = arith.constant 0 : index
    %105 = vector.load %arg5[%c7_100, %c0_101, %c0_102] : memref<9x8x8xbf16, #tpu.memory_space<vmem>>, vector<1x8x8xbf16>
    %106 = vector.shape_cast %105 : vector<1x8x8xbf16> to vector<8x8xbf16>
    %c0_103 = arith.constant 0 : index
    %c146_104 = arith.constant 146 : index
    %107 = vector.load %arg10[%c0_103, %c146_104] : memref<8x512xbf16, #tpu.memory_space<vmem>>, vector<8x288xbf16>
    %cst_105 = arith.constant dense<0.000000e+00> : vector<8x288xf32>
    %108 = tpu.matmul %106, %107, %cst_105 {dimension_numbers = #tpu.dot_dimension_numbers<[1], [0], [0], [1], [0, 0, 1, 1], [], []>} : vector<8x8xbf16>, vector<8x288xbf16>, vector<8x288xf32> -> vector<8x288xf32>
    %109 = arith.addf %104, %108 : vector<8x288xf32>
    %c8_106 = arith.constant 8 : index
    %c0_107 = arith.constant 0 : index
    %c0_108 = arith.constant 0 : index
    %110 = vector.load %arg5[%c8_106, %c0_107, %c0_108] : memref<9x8x8xbf16, #tpu.memory_space<vmem>>, vector<1x8x8xbf16>
    %111 = vector.shape_cast %110 : vector<1x8x8xbf16> to vector<8x8xbf16>
    %c0_109 = arith.constant 0 : index
    %c147_110 = arith.constant 147 : index
    %112 = vector.load %arg10[%c0_109, %c147_110] : memref<8x512xbf16, #tpu.memory_space<vmem>>, vector<8x288xbf16>
    %cst_111 = arith.constant dense<0.000000e+00> : vector<8x288xf32>
    %113 = tpu.matmul %111, %112, %cst_111 {dimension_numbers = #tpu.dot_dimension_numbers<[1], [0], [0], [1], [0, 0, 1, 1], [], []>} : vector<8x8xbf16>, vector<8x288xbf16>, vector<8x288xf32> -> vector<8x288xf32>
    %114 = arith.addf %109, %113 : vector<8x288xf32>
    %c0_112 = arith.constant 0 : index
    %c0_113 = arith.constant 0 : index
    %115 = vector.load %arg6[%c0_112, %c0_113] : memref<8x1xf32, #tpu.memory_space<vmem>>, vector<8x1xf32>
    %116 = vector.broadcast %115 : vector<8x1xf32> to vector<8x288xf32>
    %117 = arith.addf %114, %116 : vector<8x288xf32>
    %cst_114 = arith.constant 0.000000e+00 : f32
    %118 = vector.broadcast %cst_114 : f32 to vector<8x288xf32>
    %119 = arith.maximumf %117, %118 : vector<8x288xf32>
    %120 = vector.broadcast %4 : vector<1x288xf32> to vector<8x288xf32>
    %121 = arith.mulf %119, %120 : vector<8x288xf32>
    %122 = arith.truncf %121 : vector<8x288xf32> to vector<8x288xbf16>
    %c0_115 = arith.constant 0 : index
    %c128_116 = arith.constant 128 : index
    %123 = vector.load %arg10[%c0_115, %c128_116] : memref<8x512xbf16, #tpu.memory_space<vmem>>, vector<8x288xbf16>
    tpu.vector_store %arg10[%c0_115, %c128_116], %122 {strides = array<i32>} : memref<8x512xbf16, #tpu.memory_space<vmem>>, vector<8x288xbf16>,
    %cst_117 = arith.constant 0.000000e+00 : f32
    %124 = vector.broadcast %cst_117 : f32 to vector<8x288xf32>
    %c0_118 = arith.constant 0 : index
    %c0_119 = arith.constant 0 : index
    %c0_120 = arith.constant 0 : index
    %125 = vector.load %arg7[%c0_118, %c0_119, %c0_120] : memref<9x8x8xbf16, #tpu.memory_space<vmem>>, vector<1x8x8xbf16>
    %126 = vector.shape_cast %125 : vector<1x8x8xbf16> to vector<8x8xbf16>
    %c0_121 = arith.constant 0 : index
    %c109_122 = arith.constant 109 : index
    %127 = vector.load %arg10[%c0_121, %c109_122] : memref<8x512xbf16, #tpu.memory_space<vmem>>, vector<8x288xbf16>
    %cst_123 = arith.constant dense<0.000000e+00> : vector<8x288xf32>
    %128 = tpu.matmul %126, %127, %cst_123 {dimension_numbers = #tpu.dot_dimension_numbers<[1], [0], [0], [1], [0, 0, 1, 1], [], []>} : vector<8x8xbf16>, vector<8x288xbf16>, vector<8x288xf32> -> vector<8x288xf32>
    %129 = arith.addf %124, %128 : vector<8x288xf32>
    %c1_124 = arith.constant 1 : index
    %c0_125 = arith.constant 0 : index
    %c0_126 = arith.constant 0 : index
    %130 = vector.load %arg7[%c1_124, %c0_125, %c0_126] : memref<9x8x8xbf16, #tpu.memory_space<vmem>>, vector<1x8x8xbf16>
    %131 = vector.shape_cast %130 : vector<1x8x8xbf16> to vector<8x8xbf16>
    %c0_127 = arith.constant 0 : index
    %c110_128 = arith.constant 110 : index
    %132 = vector.load %arg10[%c0_127, %c110_128] : memref<8x512xbf16, #tpu.memory_space<vmem>>, vector<8x288xbf16>
    %cst_129 = arith.constant dense<0.000000e+00> : vector<8x288xf32>
    %133 = tpu.matmul %131, %132, %cst_129 {dimension_numbers = #tpu.dot_dimension_numbers<[1], [0], [0], [1], [0, 0, 1, 1], [], []>} : vector<8x8xbf16>, vector<8x288xbf16>, vector<8x288xf32> -> vector<8x288xf32>
    %134 = arith.addf %129, %133 : vector<8x288xf32>
    %c2_130 = arith.constant 2 : index
    %c0_131 = arith.constant 0 : index
    %c0_132 = arith.constant 0 : index
    %135 = vector.load %arg7[%c2_130, %c0_131, %c0_132] : memref<9x8x8xbf16, #tpu.memory_space<vmem>>, vector<1x8x8xbf16>
    %136 = vector.shape_cast %135 : vector<1x8x8xbf16> to vector<8x8xbf16>
    %c0_133 = arith.constant 0 : index
    %c111_134 = arith.constant 111 : index
    %137 = vector.load %arg10[%c0_133, %c111_134] : memref<8x512xbf16, #tpu.memory_space<vmem>>, vector<8x288xbf16>
    %cst_135 = arith.constant dense<0.000000e+00> : vector<8x288xf32>
    %138 = tpu.matmul %136, %137, %cst_135 {dimension_numbers = #tpu.dot_dimension_numbers<[1], [0], [0], [1], [0, 0, 1, 1], [], []>} : vector<8x8xbf16>, vector<8x288xbf16>, vector<8x288xf32> -> vector<8x288xf32>
    %139 = arith.addf %134, %138 : vector<8x288xf32>
    %c3_136 = arith.constant 3 : index
    %c0_137 = arith.constant 0 : index
    %c0_138 = arith.constant 0 : index
    %140 = vector.load %arg7[%c3_136, %c0_137, %c0_138] : memref<9x8x8xbf16, #tpu.memory_space<vmem>>, vector<1x8x8xbf16>
    %141 = vector.shape_cast %140 : vector<1x8x8xbf16> to vector<8x8xbf16>
    %c0_139 = arith.constant 0 : index
    %c127_140 = arith.constant 127 : index
    %142 = vector.load %arg10[%c0_139, %c127_140] : memref<8x512xbf16, #tpu.memory_space<vmem>>, vector<8x288xbf16>
    %cst_141 = arith.constant dense<0.000000e+00> : vector<8x288xf32>
    %143 = tpu.matmul %141, %142, %cst_141 {dimension_numbers = #tpu.dot_dimension_numbers<[1], [0], [0], [1], [0, 0, 1, 1], [], []>} : vector<8x8xbf16>, vector<8x288xbf16>, vector<8x288xf32> -> vector<8x288xf32>
    %144 = arith.addf %139, %143 : vector<8x288xf32>
    %c4_142 = arith.constant 4 : index
    %c0_143 = arith.constant 0 : index
    %c0_144 = arith.constant 0 : index
    %145 = vector.load %arg7[%c4_142, %c0_143, %c0_144] : memref<9x8x8xbf16, #tpu.memory_space<vmem>>, vector<1x8x8xbf16>
    %146 = vector.shape_cast %145 : vector<1x8x8xbf16> to vector<8x8xbf16>
    %c0_145 = arith.constant 0 : index
    %c128_146 = arith.constant 128 : index
    %147 = vector.load %arg10[%c0_145, %c128_146] : memref<8x512xbf16, #tpu.memory_space<vmem>>, vector<8x288xbf16>
    %cst_147 = arith.constant dense<0.000000e+00> : vector<8x288xf32>
    %148 = tpu.matmul %146, %147, %cst_147 {dimension_numbers = #tpu.dot_dimension_numbers<[1], [0], [0], [1], [0, 0, 1, 1], [], []>} : vector<8x8xbf16>, vector<8x288xbf16>, vector<8x288xf32> -> vector<8x288xf32>
    %149 = arith.addf %144, %148 : vector<8x288xf32>
    %c5_148 = arith.constant 5 : index
    %c0_149 = arith.constant 0 : index
    %c0_150 = arith.constant 0 : index
    %150 = vector.load %arg7[%c5_148, %c0_149, %c0_150] : memref<9x8x8xbf16, #tpu.memory_space<vmem>>, vector<1x8x8xbf16>
    %151 = vector.shape_cast %150 : vector<1x8x8xbf16> to vector<8x8xbf16>
    %c0_151 = arith.constant 0 : index
    %c129_152 = arith.constant 129 : index
    %152 = vector.load %arg10[%c0_151, %c129_152] : memref<8x512xbf16, #tpu.memory_space<vmem>>, vector<8x288xbf16>
    %cst_153 = arith.constant dense<0.000000e+00> : vector<8x288xf32>
    %153 = tpu.matmul %151, %152, %cst_153 {dimension_numbers = #tpu.dot_dimension_numbers<[1], [0], [0], [1], [0, 0, 1, 1], [], []>} : vector<8x8xbf16>, vector<8x288xbf16>, vector<8x288xf32> -> vector<8x288xf32>
    %154 = arith.addf %149, %153 : vector<8x288xf32>
    %c6_154 = arith.constant 6 : index
    %c0_155 = arith.constant 0 : index
    %c0_156 = arith.constant 0 : index
    %155 = vector.load %arg7[%c6_154, %c0_155, %c0_156] : memref<9x8x8xbf16, #tpu.memory_space<vmem>>, vector<1x8x8xbf16>
    %156 = vector.shape_cast %155 : vector<1x8x8xbf16> to vector<8x8xbf16>
    %c0_157 = arith.constant 0 : index
    %c145_158 = arith.constant 145 : index
    %157 = vector.load %arg10[%c0_157, %c145_158] : memref<8x512xbf16, #tpu.memory_space<vmem>>, vector<8x288xbf16>
    %cst_159 = arith.constant dense<0.000000e+00> : vector<8x288xf32>
    %158 = tpu.matmul %156, %157, %cst_159 {dimension_numbers = #tpu.dot_dimension_numbers<[1], [0], [0], [1], [0, 0, 1, 1], [], []>} : vector<8x8xbf16>, vector<8x288xbf16>, vector<8x288xf32> -> vector<8x288xf32>
    %159 = arith.addf %154, %158 : vector<8x288xf32>
    %c7_160 = arith.constant 7 : index
    %c0_161 = arith.constant 0 : index
    %c0_162 = arith.constant 0 : index
    %160 = vector.load %arg7[%c7_160, %c0_161, %c0_162] : memref<9x8x8xbf16, #tpu.memory_space<vmem>>, vector<1x8x8xbf16>
    %161 = vector.shape_cast %160 : vector<1x8x8xbf16> to vector<8x8xbf16>
    %c0_163 = arith.constant 0 : index
    %c146_164 = arith.constant 146 : index
    %162 = vector.load %arg10[%c0_163, %c146_164] : memref<8x512xbf16, #tpu.memory_space<vmem>>, vector<8x288xbf16>
    %cst_165 = arith.constant dense<0.000000e+00> : vector<8x288xf32>
    %163 = tpu.matmul %161, %162, %cst_165 {dimension_numbers = #tpu.dot_dimension_numbers<[1], [0], [0], [1], [0, 0, 1, 1], [], []>} : vector<8x8xbf16>, vector<8x288xbf16>, vector<8x288xf32> -> vector<8x288xf32>
    %164 = arith.addf %159, %163 : vector<8x288xf32>
    %c8_166 = arith.constant 8 : index
    %c0_167 = arith.constant 0 : index
    %c0_168 = arith.constant 0 : index
    %165 = vector.load %arg7[%c8_166, %c0_167, %c0_168] : memref<9x8x8xbf16, #tpu.memory_space<vmem>>, vector<1x8x8xbf16>
    %166 = vector.shape_cast %165 : vector<1x8x8xbf16> to vector<8x8xbf16>
    %c0_169 = arith.constant 0 : index
    %c147_170 = arith.constant 147 : index
    %167 = vector.load %arg10[%c0_169, %c147_170] : memref<8x512xbf16, #tpu.memory_space<vmem>>, vector<8x288xbf16>
    %cst_171 = arith.constant dense<0.000000e+00> : vector<8x288xf32>
    %168 = tpu.matmul %166, %167, %cst_171 {dimension_numbers = #tpu.dot_dimension_numbers<[1], [0], [0], [1], [0, 0, 1, 1], [], []>} : vector<8x8xbf16>, vector<8x288xbf16>, vector<8x288xf32> -> vector<8x288xf32>
    %169 = arith.addf %164, %168 : vector<8x288xf32>
    %c0_172 = arith.constant 0 : index
    %c0_173 = arith.constant 0 : index
    %170 = vector.load %arg8[%c0_172, %c0_173] : memref<8x1xf32, #tpu.memory_space<vmem>>, vector<8x1xf32>
    %171 = vector.broadcast %170 : vector<8x1xf32> to vector<8x288xf32>
    %172 = arith.addf %169, %171 : vector<8x288xf32>
    %cst_174 = arith.constant 0.000000e+00 : f32
    %173 = vector.broadcast %cst_174 : f32 to vector<8x288xf32>
    %174 = arith.maximumf %172, %173 : vector<8x288xf32>
    %175 = vector.extract_strided_slice %174 {offsets = [0, 0], sizes = [8, 16], strides = [1, 1]} : vector<8x288xf32> to vector<8x16xf32>
    %c0_175 = arith.constant 0 : index
    %c0_176 = arith.constant 0 : index
    %c0_177 = arith.constant 0 : index
    %176 = vector.load %arg9[%c0_175, %c0_176, %c0_177] : memref<1x8x256xf32, #tpu.memory_space<vmem>>, vector<1x8x16xf32>
    %177 = vector.shape_cast %176 : vector<1x8x16xf32> to vector<8x16xf32>
    %178 = vector.shape_cast %175 : vector<8x16xf32> to vector<1x8x16xf32>
    tpu.vector_store %arg9[%c0_175, %c0_176, %c0_177], %178 {strides = array<i32>} : memref<1x8x256xf32, #tpu.memory_space<vmem>>, vector<1x8x16xf32>,
    %179 = vector.extract_strided_slice %174 {offsets = [0, 18], sizes = [8, 16], strides = [1, 1]} : vector<8x288xf32> to vector<8x16xf32>
    %c0_178 = arith.constant 0 : index
    %c0_179 = arith.constant 0 : index
    %c16 = arith.constant 16 : index
    %180 = vector.load %arg9[%c0_178, %c0_179, %c16] : memref<1x8x256xf32, #tpu.memory_space<vmem>>, vector<1x8x16xf32>
    %181 = vector.shape_cast %180 : vector<1x8x16xf32> to vector<8x16xf32>
    %182 = vector.shape_cast %179 : vector<8x16xf32> to vector<1x8x16xf32>
    tpu.vector_store %arg9[%c0_178, %c0_179, %c16], %182 {strides = array<i32>} : memref<1x8x256xf32, #tpu.memory_space<vmem>>, vector<1x8x16xf32>,
    %183 = vector.extract_strided_slice %174 {offsets = [0, 36], sizes = [8, 16], strides = [1, 1]} : vector<8x288xf32> to vector<8x16xf32>
    %c0_180 = arith.constant 0 : index
    %c0_181 = arith.constant 0 : index
    %c32 = arith.constant 32 : index
    %184 = vector.load %arg9[%c0_180, %c0_181, %c32] : memref<1x8x256xf32, #tpu.memory_space<vmem>>, vector<1x8x16xf32>
    %185 = vector.shape_cast %184 : vector<1x8x16xf32> to vector<8x16xf32>
    %186 = vector.shape_cast %183 : vector<8x16xf32> to vector<1x8x16xf32>
    tpu.vector_store %arg9[%c0_180, %c0_181, %c32], %186 {strides = array<i32>} : memref<1x8x256xf32, #tpu.memory_space<vmem>>, vector<1x8x16xf32>,
    %187 = vector.extract_strided_slice %174 {offsets = [0, 54], sizes = [8, 16], strides = [1, 1]} : vector<8x288xf32> to vector<8x16xf32>
    %c0_182 = arith.constant 0 : index
    %c0_183 = arith.constant 0 : index
    %c48 = arith.constant 48 : index
    %188 = vector.load %arg9[%c0_182, %c0_183, %c48] : memref<1x8x256xf32, #tpu.memory_space<vmem>>, vector<1x8x16xf32>
    %189 = vector.shape_cast %188 : vector<1x8x16xf32> to vector<8x16xf32>
    %190 = vector.shape_cast %187 : vector<8x16xf32> to vector<1x8x16xf32>
    tpu.vector_store %arg9[%c0_182, %c0_183, %c48], %190 {strides = array<i32>} : memref<1x8x256xf32, #tpu.memory_space<vmem>>, vector<1x8x16xf32>,
    %191 = vector.extract_strided_slice %174 {offsets = [0, 72], sizes = [8, 16], strides = [1, 1]} : vector<8x288xf32> to vector<8x16xf32>
    %c0_184 = arith.constant 0 : index
    %c0_185 = arith.constant 0 : index
    %c64 = arith.constant 64 : index
    %192 = vector.load %arg9[%c0_184, %c0_185, %c64] : memref<1x8x256xf32, #tpu.memory_space<vmem>>, vector<1x8x16xf32>
    %193 = vector.shape_cast %192 : vector<1x8x16xf32> to vector<8x16xf32>
    %194 = vector.shape_cast %191 : vector<8x16xf32> to vector<1x8x16xf32>
    tpu.vector_store %arg9[%c0_184, %c0_185, %c64], %194 {strides = array<i32>} : memref<1x8x256xf32, #tpu.memory_space<vmem>>, vector<1x8x16xf32>,
    %195 = vector.extract_strided_slice %174 {offsets = [0, 90], sizes = [8, 16], strides = [1, 1]} : vector<8x288xf32> to vector<8x16xf32>
    %c0_186 = arith.constant 0 : index
    %c0_187 = arith.constant 0 : index
    %c80 = arith.constant 80 : index
    %196 = vector.load %arg9[%c0_186, %c0_187, %c80] : memref<1x8x256xf32, #tpu.memory_space<vmem>>, vector<1x8x16xf32>
    %197 = vector.shape_cast %196 : vector<1x8x16xf32> to vector<8x16xf32>
    %198 = vector.shape_cast %195 : vector<8x16xf32> to vector<1x8x16xf32>
    tpu.vector_store %arg9[%c0_186, %c0_187, %c80], %198 {strides = array<i32>} : memref<1x8x256xf32, #tpu.memory_space<vmem>>, vector<1x8x16xf32>,
    %199 = vector.extract_strided_slice %174 {offsets = [0, 108], sizes = [8, 16], strides = [1, 1]} : vector<8x288xf32> to vector<8x16xf32>
    %c0_188 = arith.constant 0 : index
    %c0_189 = arith.constant 0 : index
    %c96 = arith.constant 96 : index
    %200 = vector.load %arg9[%c0_188, %c0_189, %c96] : memref<1x8x256xf32, #tpu.memory_space<vmem>>, vector<1x8x16xf32>
    %201 = vector.shape_cast %200 : vector<1x8x16xf32> to vector<8x16xf32>
    %202 = vector.shape_cast %199 : vector<8x16xf32> to vector<1x8x16xf32>
    tpu.vector_store %arg9[%c0_188, %c0_189, %c96], %202 {strides = array<i32>} : memref<1x8x256xf32, #tpu.memory_space<vmem>>, vector<1x8x16xf32>,
    %203 = vector.extract_strided_slice %174 {offsets = [0, 126], sizes = [8, 16], strides = [1, 1]} : vector<8x288xf32> to vector<8x16xf32>
    %c0_190 = arith.constant 0 : index
    %c0_191 = arith.constant 0 : index
    %c112 = arith.constant 112 : index
    %204 = vector.load %arg9[%c0_190, %c0_191, %c112] : memref<1x8x256xf32, #tpu.memory_space<vmem>>, vector<1x8x16xf32>
    %205 = vector.shape_cast %204 : vector<1x8x16xf32> to vector<8x16xf32>
    %206 = vector.shape_cast %203 : vector<8x16xf32> to vector<1x8x16xf32>
    tpu.vector_store %arg9[%c0_190, %c0_191, %c112], %206 {strides = array<i32>} : memref<1x8x256xf32, #tpu.memory_space<vmem>>, vector<1x8x16xf32>,
    %207 = vector.extract_strided_slice %174 {offsets = [0, 144], sizes = [8, 16], strides = [1, 1]} : vector<8x288xf32> to vector<8x16xf32>
    %c0_192 = arith.constant 0 : index
    %c0_193 = arith.constant 0 : index
    %c128_194 = arith.constant 128 : index
    %208 = vector.load %arg9[%c0_192, %c0_193, %c128_194] : memref<1x8x256xf32, #tpu.memory_space<vmem>>, vector<1x8x16xf32>
    %209 = vector.shape_cast %208 : vector<1x8x16xf32> to vector<8x16xf32>
    %210 = vector.shape_cast %207 : vector<8x16xf32> to vector<1x8x16xf32>
    tpu.vector_store %arg9[%c0_192, %c0_193, %c128_194], %210 {strides = array<i32>} : memref<1x8x256xf32, #tpu.memory_space<vmem>>, vector<1x8x16xf32>,
    %211 = vector.extract_strided_slice %174 {offsets = [0, 162], sizes = [8, 16], strides = [1, 1]} : vector<8x288xf32> to vector<8x16xf32>
    %c0_195 = arith.constant 0 : index
    %c0_196 = arith.constant 0 : index
    %c144 = arith.constant 144 : index
    %212 = vector.load %arg9[%c0_195, %c0_196, %c144] : memref<1x8x256xf32, #tpu.memory_space<vmem>>, vector<1x8x16xf32>
    %213 = vector.shape_cast %212 : vector<1x8x16xf32> to vector<8x16xf32>
    %214 = vector.shape_cast %211 : vector<8x16xf32> to vector<1x8x16xf32>
    tpu.vector_store %arg9[%c0_195, %c0_196, %c144], %214 {strides = array<i32>} : memref<1x8x256xf32, #tpu.memory_space<vmem>>, vector<1x8x16xf32>,
    %215 = vector.extract_strided_slice %174 {offsets = [0, 180], sizes = [8, 16], strides = [1, 1]} : vector<8x288xf32> to vector<8x16xf32>
    %c0_197 = arith.constant 0 : index
    %c0_198 = arith.constant 0 : index
    %c160 = arith.constant 160 : index
    %216 = vector.load %arg9[%c0_197, %c0_198, %c160] : memref<1x8x256xf32, #tpu.memory_space<vmem>>, vector<1x8x16xf32>
    %217 = vector.shape_cast %216 : vector<1x8x16xf32> to vector<8x16xf32>
    %218 = vector.shape_cast %215 : vector<8x16xf32> to vector<1x8x16xf32>
    tpu.vector_store %arg9[%c0_197, %c0_198, %c160], %218 {strides = array<i32>} : memref<1x8x256xf32, #tpu.memory_space<vmem>>, vector<1x8x16xf32>,
    %219 = vector.extract_strided_slice %174 {offsets = [0, 198], sizes = [8, 16], strides = [1, 1]} : vector<8x288xf32> to vector<8x16xf32>
    %c0_199 = arith.constant 0 : index
    %c0_200 = arith.constant 0 : index
    %c176 = arith.constant 176 : index
    %220 = vector.load %arg9[%c0_199, %c0_200, %c176] : memref<1x8x256xf32, #tpu.memory_space<vmem>>, vector<1x8x16xf32>
    %221 = vector.shape_cast %220 : vector<1x8x16xf32> to vector<8x16xf32>
    %222 = vector.shape_cast %219 : vector<8x16xf32> to vector<1x8x16xf32>
    tpu.vector_store %arg9[%c0_199, %c0_200, %c176], %222 {strides = array<i32>} : memref<1x8x256xf32, #tpu.memory_space<vmem>>, vector<1x8x16xf32>,
    %223 = vector.extract_strided_slice %174 {offsets = [0, 216], sizes = [8, 16], strides = [1, 1]} : vector<8x288xf32> to vector<8x16xf32>
    %c0_201 = arith.constant 0 : index
    %c0_202 = arith.constant 0 : index
    %c192 = arith.constant 192 : index
    %224 = vector.load %arg9[%c0_201, %c0_202, %c192] : memref<1x8x256xf32, #tpu.memory_space<vmem>>, vector<1x8x16xf32>
    %225 = vector.shape_cast %224 : vector<1x8x16xf32> to vector<8x16xf32>
    %226 = vector.shape_cast %223 : vector<8x16xf32> to vector<1x8x16xf32>
    tpu.vector_store %arg9[%c0_201, %c0_202, %c192], %226 {strides = array<i32>} : memref<1x8x256xf32, #tpu.memory_space<vmem>>, vector<1x8x16xf32>,
    %227 = vector.extract_strided_slice %174 {offsets = [0, 234], sizes = [8, 16], strides = [1, 1]} : vector<8x288xf32> to vector<8x16xf32>
    %c0_203 = arith.constant 0 : index
    %c0_204 = arith.constant 0 : index
    %c208 = arith.constant 208 : index
    %228 = vector.load %arg9[%c0_203, %c0_204, %c208] : memref<1x8x256xf32, #tpu.memory_space<vmem>>, vector<1x8x16xf32>
    %229 = vector.shape_cast %228 : vector<1x8x16xf32> to vector<8x16xf32>
    %230 = vector.shape_cast %227 : vector<8x16xf32> to vector<1x8x16xf32>
    tpu.vector_store %arg9[%c0_203, %c0_204, %c208], %230 {strides = array<i32>} : memref<1x8x256xf32, #tpu.memory_space<vmem>>, vector<1x8x16xf32>,
    %231 = vector.extract_strided_slice %174 {offsets = [0, 252], sizes = [8, 16], strides = [1, 1]} : vector<8x288xf32> to vector<8x16xf32>
    %c0_205 = arith.constant 0 : index
    %c0_206 = arith.constant 0 : index
    %c224 = arith.constant 224 : index
    %232 = vector.load %arg9[%c0_205, %c0_206, %c224] : memref<1x8x256xf32, #tpu.memory_space<vmem>>, vector<1x8x16xf32>
    %233 = vector.shape_cast %232 : vector<1x8x16xf32> to vector<8x16xf32>
    %234 = vector.shape_cast %231 : vector<8x16xf32> to vector<1x8x16xf32>
    tpu.vector_store %arg9[%c0_205, %c0_206, %c224], %234 {strides = array<i32>} : memref<1x8x256xf32, #tpu.memory_space<vmem>>, vector<1x8x16xf32>,
    %235 = vector.extract_strided_slice %174 {offsets = [0, 270], sizes = [8, 16], strides = [1, 1]} : vector<8x288xf32> to vector<8x16xf32>
    %c0_207 = arith.constant 0 : index
    %c0_208 = arith.constant 0 : index
    %c240 = arith.constant 240 : index
    %236 = vector.load %arg9[%c0_207, %c0_208, %c240] : memref<1x8x256xf32, #tpu.memory_space<vmem>>, vector<1x8x16xf32>
    %237 = vector.shape_cast %236 : vector<1x8x16xf32> to vector<8x16xf32>
    %238 = vector.shape_cast %235 : vector<8x16xf32> to vector<1x8x16xf32>
    tpu.vector_store %arg9[%c0_207, %c0_208, %c240], %238 {strides = array<i32>} : memref<1x8x256xf32, #tpu.memory_space<vmem>>, vector<1x8x16xf32>,
    return
  }
  func.func @transform_0(%arg0: i32) -> (i32, i32, i32) {
    %c0_i32 = arith.constant 0 : i32
    %c0_i32_0 = arith.constant 0 : i32
    %c0_i32_1 = arith.constant 0 : i32
    return %arg0, %c0_i32, %c0_i32_0 : i32, i32, i32
  }
  func.func @transform_1(%arg0: i32) -> (i32, i32) {
    %c0_i32 = arith.constant 0 : i32
    %c0_i32_0 = arith.constant 0 : i32
    %c0_i32_1 = arith.constant 0 : i32
    return %c0_i32, %c0_i32_0 : i32, i32
  }
  func.func @transform_2(%arg0: i32) -> (i32, i32, i32) {
    %c0_i32 = arith.constant 0 : i32
    %c0_i32_0 = arith.constant 0 : i32
    %c0_i32_1 = arith.constant 0 : i32
    %c0_i32_2 = arith.constant 0 : i32
    return %c0_i32, %c0_i32_0, %c0_i32_1 : i32, i32, i32
  }
  func.func @transform_3(%arg0: i32) -> (i32, i32) {
    %c0_i32 = arith.constant 0 : i32
    %c0_i32_0 = arith.constant 0 : i32
    %c0_i32_1 = arith.constant 0 : i32
    return %c0_i32, %c0_i32_0 : i32, i32
  }
  func.func @transform_4(%arg0: i32) -> (i32, i32, i32) {
    %c0_i32 = arith.constant 0 : i32
    %c0_i32_0 = arith.constant 0 : i32
    %c0_i32_1 = arith.constant 0 : i32
    %c0_i32_2 = arith.constant 0 : i32
    return %c0_i32, %c0_i32_0, %c0_i32_1 : i32, i32, i32
  }
  func.func @transform_5(%arg0: i32) -> (i32, i32) {
    %c0_i32 = arith.constant 0 : i32
    %c0_i32_0 = arith.constant 0 : i32
    %c0_i32_1 = arith.constant 0 : i32
    return %c0_i32, %c0_i32_0 : i32, i32
  }
  func.func @transform_6(%arg0: i32) -> (i32, i32, i32) {
    %c0_i32 = arith.constant 0 : i32
    %c0_i32_0 = arith.constant 0 : i32
    %c0_i32_1 = arith.constant 0 : i32
    %c0_i32_2 = arith.constant 0 : i32
    return %c0_i32, %c0_i32_0, %c0_i32_1 : i32, i32, i32
  }
  func.func @transform_7(%arg0: i32) -> (i32, i32) {
    %c0_i32 = arith.constant 0 : i32
    %c0_i32_0 = arith.constant 0 : i32
    %c0_i32_1 = arith.constant 0 : i32
    return %c0_i32, %c0_i32_0 : i32, i32
  }
  func.func @transform_8(%arg0: i32) -> (i32, i32, i32) {
    %c0_i32 = arith.constant 0 : i32
    %c0_i32_0 = arith.constant 0 : i32
    %c0_i32_1 = arith.constant 0 : i32
    return %arg0, %c0_i32, %c0_i32_0 : i32, i32, i32
  }
}

</mosaic_0001>

<llo_original>
// kernel: _decoder_block_apply.1
$region0: #{_decoder_block_apply.1}
  #allocation0 [shape = 'u32[]', space=smem, size = 0x4, offset = 0x4, fixed_abs, tag = 'smem constant byte address 0x4 - core index']
  #allocation1 [shape = 'u32[72,128]{1,0:T(1,128)}', space=vmem, size = 0x9000, scoped, tag = 'internal scratch']
  #allocation2 [shape = 'bf16[8,512]{1,0:T(8,128)(2,1)}', space=vmem, size = 0x2000, scoped, tag = 'scratch operand']
  %s0 = inlined_call_operand.vmem [shape: bf16[2,16,512], index: 0, kind: input, shape index: {}]
  %s1 = inlined_call_operand.vmem [shape: f32[1,288], index: 1, kind: input, shape index: {}]
  %s2 = inlined_call_operand.vmem [shape: bf16[9,8,16], index: 2, kind: input, shape index: {}]
  %s3 = inlined_call_operand.vmem [shape: f32[8,1], index: 3, kind: input, shape index: {}]
  %s4 = inlined_call_operand.vmem [shape: bf16[9,8,8], index: 4, kind: input, shape index: {}]
  %s5 = inlined_call_operand.vmem [shape: f32[8,1], index: 5, kind: input, shape index: {}]
  %s6 = inlined_call_operand.vmem [shape: bf16[9,8,8], index: 6, kind: input, shape index: {}]
  %s7 = inlined_call_operand.vmem [shape: f32[8,1], index: 7, kind: input, shape index: {}]
  %s8 = inlined_call_operand.vmem [shape: f32[2,8,256], index: 8, kind: output, shape index: {}]
  %s9 = sld [smem:[#allocation0]]
  $region65: #{_decoder_block_apply.1} parent=0
    _
  %s11 = ssub.s32 1, %s9
  %s12 = scalar_select 0, %s11, %s9
  loop: start=0, step=1, limit=4
  $region2: #{_decoder_block_apply.1} parent=0 // loop_pre_header
    _
  $region3: #{_decoder_block_apply.1} parent=0 // loop_header
    %s14 = sphi 0, %s18
    %p15 = scmp.ge.s32.totalorder %s14, 4
    %s24 = sphi 0, %s26
    %s27 = sphi 0, %s24
    %s28 = sphi 0, %s27
    %s44 = sphi 0, %s28
    %s48 = sphi 0, %s48
    %s50 = sphi 0, %s48
    %s51 = sphi 0, %s50
    %s65 = sphi 0, %s51
    %s69 = sphi 0, %s69
    %s71 = sphi 0, %s69
    %s72 = sphi 0, %s71
    %s86 = sphi 0, %s72
    %s90 = sphi 0, %s90
    %s92 = sphi 0, %s90
    %s93 = sphi 0, %s92
    %s107 = sphi 0, %s93
    %s111 = sphi 0, %s111
    %s113 = sphi 0, %s111
    %s114 = sphi 0, %s113
    %s128 = sphi 0, %s114
    %s132 = sphi 0, %s132
    %s134 = sphi 0, %s132
    %s135 = sphi 0, %s134
    %s149 = sphi 0, %s135
    %s153 = sphi 0, %s153
    %s155 = sphi 0, %s153
    %s156 = sphi 0, %s155
    %s170 = sphi 0, %s156
    %s174 = sphi 0, %s174
    %s176 = sphi 0, %s174
    %s177 = sphi 0, %s176
    %s191 = sphi 0, %s177
    %s197 = sphi 0, %s199
    %s200 = sphi 0, %s197
    %s201 = sphi 0, %s200
    %s217 = sphi 0, %s201
  $region4: #{_decoder_block_apply.1} parent=0 // loop_header_branch
    %17 = sbr.rel (%p15) target = $region8
  $region5: #{_decoder_block_apply.1} parent=0 // loop_body
    %s19 = ssub.s32 %s14, 1
    %s20 = ssub.s32 %s14, 2
    %s21 = sadd.s32 %s14, 1
    %s22 = ssub.s32 %s14, %s21
    %p23 = scmp.eq.s32.totalorder %s22, 0
    %s25 = sadd.s32 %s24, 1
    %s26 = scalar_select %p23, %s24, %s25
    %p29 = pneg %p23
    %p30 = scmp.eq.s32.totalorder %s14, 1
    %p31 = por %p29, %p30
    %p32 = scmp.ne.s32.totalorder %s24, %s27
    %p33 = scmp.eq.s32.totalorder %s14, 0
    %p34 = por %p32, %p33
    %p35 = scmp.ne.s32.totalorder %s24, %s27
    %p36 = scmp.eq.s32.totalorder %s19, 1
    %p37 = por %p35, %p36
    %p38 = scmp.ne.s32.totalorder %s27, %s28
    %p39 = scmp.eq.s32.totalorder %s19, 0
    %p40 = por %p38, %p39
    %p41 = scmp.ne.s32.totalorder %s27, %s28
    %p42 = scmp.eq.s32.totalorder %s20, 1
    %p43 = por %p41, %p42
    %p45 = scmp.ne.s32.totalorder %s28, %s44
    %p46 = scmp.eq.s32.totalorder %s20, 0
    %p47 = por %p45, %p46
    %s49 = sadd.s32 %s48, 1
    %p52 = scmp.eq.s32.totalorder %s14, 1
    %p53 = scmp.ne.s32.totalorder %s48, %s50
    %p54 = scmp.eq.s32.totalorder %s14, 0
    %p55 = por %p53, %p54
    %p56 = scmp.ne.s32.totalorder %s48, %s50
    %p57 = scmp.eq.s32.totalorder %s19, 1
    %p58 = por %p56, %p57
    %p59 = scmp.ne.s32.totalorder %s50, %s51
    %p60 = scmp.eq.s32.totalorder %s19, 0
    %p61 = por %p59, %p60
    %p62 = scmp.ne.s32.totalorder %s50, %s51
    %p63 = scmp.eq.s32.totalorder %s20, 1
    %p64 = por %p62, %p63
    %p66 = scmp.ne.s32.totalorder %s51, %s65
    %p67 = scmp.eq.s32.totalorder %s20, 0
    %p68 = por %p66, %p67
    %s70 = sadd.s32 %s69, 1
    %p73 = scmp.eq.s32.totalorder %s14, 1
    %p74 = scmp.ne.s32.totalorder %s69, %s71
    %p75 = scmp.eq.s32.totalorder %s14, 0
    %p76 = por %p74, %p75
    %p77 = scmp.ne.s32.totalorder %s69, %s71
    %p78 = scmp.eq.s32.totalorder %s19, 1
    %p79 = por %p77, %p78
    %p80 = scmp.ne.s32.totalorder %s71, %s72
    %p81 = scmp.eq.s32.totalorder %s19, 0
    %p82 = por %p80, %p81
    %p83 = scmp.ne.s32.totalorder %s71, %s72
    %p84 = scmp.eq.s32.totalorder %s20, 1
    %p85 = por %p83, %p84
    %p87 = scmp.ne.s32.totalorder %s72, %s86
    %p88 = scmp.eq.s32.totalorder %s20, 0
    %p89 = por %p87, %p88
    %s91 = sadd.s32 %s90, 1
    %p94 = scmp.eq.s32.totalorder %s14, 1
    %p95 = scmp.ne.s32.totalorder %s90, %s92
    %p96 = scmp.eq.s32.totalorder %s14, 0
    %p97 = por %p95, %p96
    %p98 = scmp.ne.s32.totalorder %s90, %s92
    %p99 = scmp.eq.s32.totalorder %s19, 1
    %p100 = por %p98, %p99
    %p101 = scmp.ne.s32.totalorder %s92, %s93
    %p102 = scmp.eq.s32.totalorder %s19, 0
    %p103 = por %p101, %p102
    %p104 = scmp.ne.s32.totalorder %s92, %s93
    %p105 = scmp.eq.s32.totalorder %s20, 1
    %p106 = por %p104, %p105
    %p108 = scmp.ne.s32.totalorder %s93, %s107
    %p109 = scmp.eq.s32.totalorder %s20, 0
    %p110 = por %p108, %p109
    %s112 = sadd.s32 %s111, 1
    %p115 = scmp.eq.s32.totalorder %s14, 1
    %p116 = scmp.ne.s32.totalorder %s111, %s113
    %p117 = scmp.eq.s32.totalorder %s14, 0
    %p118 = por %p116, %p117
    %p119 = scmp.ne.s32.totalorder %s111, %s113
    %p120 = scmp.eq.s32.totalorder %s19, 1
    %p121 = por %p119, %p120
    %p122 = scmp.ne.s32.totalorder %s113, %s114
    %p123 = scmp.eq.s32.totalorder %s19, 0
    %p124 = por %p122, %p123
    %p125 = scmp.ne.s32.totalorder %s113, %s114
    %p126 = scmp.eq.s32.totalorder %s20, 1
    %p127 = por %p125, %p126
    %p129 = scmp.ne.s32.totalorder %s114, %s128
    %p130 = scmp.eq.s32.totalorder %s20, 0
    %p131 = por %p129, %p130
    %s133 = sadd.s32 %s132, 1
    %p136 = scmp.eq.s32.totalorder %s14, 1
    %p137 = scmp.ne.s32.totalorder %s132, %s134
    %p138 = scmp.eq.s32.totalorder %s14, 0
    %p139 = por %p137, %p138
    %p140 = scmp.ne.s32.totalorder %s132, %s134
    %p141 = scmp.eq.s32.totalorder %s19, 1
    %p142 = por %p140, %p141
    %p143 = scmp.ne.s32.totalorder %s134, %s135
    %p144 = scmp.eq.s32.totalorder %s19, 0
    %p145 = por %p143, %p144
    %p146 = scmp.ne.s32.totalorder %s134, %s135
    %p147 = scmp.eq.s32.totalorder %s20, 1
    %p148 = por %p146, %p147
    %p150 = scmp.ne.s32.totalorder %s135, %s149
    %p151 = scmp.eq.s32.totalorder %s20, 0
    %p152 = por %p150, %p151
    %s154 = sadd.s32 %s153, 1
    %p157 = scmp.eq.s32.totalorder %s14, 1
    %p158 = scmp.ne.s32.totalorder %s153, %s155
    %p159 = scmp.eq.s32.totalorder %s14, 0
    %p160 = por %p158, %p159
    %p161 = scmp.ne.s32.totalorder %s153, %s155
    %p162 = scmp.eq.s32.totalorder %s19, 1
    %p163 = por %p161, %p162
    %p164 = scmp.ne.s32.totalorder %s155, %s156
    %p165 = scmp.eq.s32.totalorder %s19, 0
    %p166 = por %p164, %p165
    %p167 = scmp.ne.s32.totalorder %s155, %s156
    %p168 = scmp.eq.s32.totalorder %s20, 1
    %p169 = por %p167, %p168
    %p171 = scmp.ne.s32.totalorder %s156, %s170
    %p172 = scmp.eq.s32.totalorder %s20, 0
    %p173 = por %p171, %p172
    %s175 = sadd.s32 %s174, 1
    %p178 = scmp.eq.s32.totalorder %s14, 1
    %p179 = scmp.ne.s32.totalorder %s174, %s176
    %p180 = scmp.eq.s32.totalorder %s14, 0
    %p181 = por %p179, %p180
    %p182 = scmp.ne.s32.totalorder %s174, %s176
    %p183 = scmp.eq.s32.totalorder %s19, 1
    %p184 = por %p182, %p183
    %p185 = scmp.ne.s32.totalorder %s176, %s177
    %p186 = scmp.eq.s32.totalorder %s19, 0
    %p187 = por %p185, %p186
    %p188 = scmp.ne.s32.totalorder %s176, %s177
    %p189 = scmp.eq.s32.totalorder %s20, 1
    %p190 = por %p188, %p189
    %p192 = scmp.ne.s32.totalorder %s177, %s191
    %p193 = scmp.eq.s32.totalorder %s20, 0
    %p194 = por %p192, %p193
    %s195 = ssub.s32 %s14, %s21
    %p196 = scmp.eq.s32.totalorder %s195, 0
    %s198 = sadd.s32 %s197, 1
    %s199 = scalar_select %p196, %s197, %s198
    %p202 = pneg %p196
    %p203 = scmp.eq.s32.totalorder %s14, 1
    %p204 = por %p202, %p203
    %p205 = scmp.ne.s32.totalorder %s197, %s200
    %p206 = scmp.eq.s32.totalorder %s14, 0
    %p207 = por %p205, %p206
    %p208 = scmp.ne.s32.totalorder %s197, %s200
    %p209 = scmp.eq.s32.totalorder %s19, 1
    %p210 = por %p208, %p209
    %p211 = scmp.ne.s32.totalorder %s200, %s201
    %p212 = scmp.eq.s32.totalorder %s19, 0
    %p213 = por %p211, %p212
    %p214 = scmp.ne.s32.totalorder %s200, %s201
    %p215 = scmp.eq.s32.totalorder %s20, 1
    %p216 = por %p214, %p215
    %p218 = scmp.ne.s32.totalorder %s201, %s217
    %p219 = scmp.eq.s32.totalorder %s20, 0
    %p220 = por %p218, %p219
    %p221 = scmp.le.s32.totalorder 1, %s14
    %p222 = scmp.lt.s32.totalorder %s14, 3
    %p223 = pnand %p221, %p222
    %p224 = pneg %p223
    // Predicated region
    $region9: #{_decoder_block_apply.1} parent=5 // pred_check
      _
    $region10: #{_decoder_block_apply.1} parent=5 // pred_check_branch
      %226 = sbr.rel (%p223) target = $region12
    $region11: #{_decoder_block_apply.1} parent=5 // pred_region
      %s227 = ssub.s32 %s14, 1
      // Predicated region
      $region13: #{_decoder_block_apply.1} parent=11 // pred_check
        %p228 = pneg %p61
      $region14: #{_decoder_block_apply.1} parent=11 // pred_check_branch
        %230 = sbr.rel (%p228) target = $region16
      $region15: #{_decoder_block_apply.1} parent=11 // pred_region
        _
      $region16: #{_decoder_block_apply.1} parent=11 // pred_fallthru
        _
      // Predicated region
      $region17: #{_decoder_block_apply.1} parent=11 // pred_check
        %p231 = pneg %p82
      $region18: #{_decoder_block_apply.1} parent=11 // pred_check_branch
        %233 = sbr.rel (%p231) target = $region20
      $region19: #{_decoder_block_apply.1} parent=11 // pred_region
        _
      $region20: #{_decoder_block_apply.1} parent=11 // pred_fallthru
        _
      // Predicated region
      $region21: #{_decoder_block_apply.1} parent=11 // pred_check
        %p234 = pneg %p103
      $region22: #{_decoder_block_apply.1} parent=11 // pred_check_branch
        %236 = sbr.rel (%p234) target = $region24
      $region23: #{_decoder_block_apply.1} parent=11 // pred_region
        _
      $region24: #{_decoder_block_apply.1} parent=11 // pred_fallthru
        _
      // Predicated region
      $region25: #{_decoder_block_apply.1} parent=11 // pred_check
        %p237 = pneg %p124
      $region26: #{_decoder_block_apply.1} parent=11 // pred_check_branch
        %239 = sbr.rel (%p237) target = $region28
      $region27: #{_decoder_block_apply.1} parent=11 // pred_region
        _
      $region28: #{_decoder_block_apply.1} parent=11 // pred_fallthru
        _
      // Predicated region
      $region29: #{_decoder_block_apply.1} parent=11 // pred_check
        %p240 = pneg %p145
      $region30: #{_decoder_block_apply.1} parent=11 // pred_check_branch
        %242 = sbr.rel (%p240) target = $region32
      $region31: #{_decoder_block_apply.1} parent=11 // pred_region
        _
      $region32: #{_decoder_block_apply.1} parent=11 // pred_fallthru
        _
      // Predicated region
      $region33: #{_decoder_block_apply.1} parent=11 // pred_check
        %p243 = pneg %p166
      $region34: #{_decoder_block_apply.1} parent=11 // pred_check_branch
        %245 = sbr.rel (%p243) target = $region36
      $region35: #{_decoder_block_apply.1} parent=11 // pred_region
        _
      $region36: #{_decoder_block_apply.1} parent=11 // pred_fallthru
        _
      // Predicated region
      $region37: #{_decoder_block_apply.1} parent=11 // pred_check
        %p246 = pneg %p187
      $region38: #{_decoder_block_apply.1} parent=11 // pred_check_branch
        %248 = sbr.rel (%p246) target = $region40
      $region39: #{_decoder_block_apply.1} parent=11 // pred_region
        _
      $region40: #{_decoder_block_apply.1} parent=11 // pred_fallthru
        _
    $region12: #{_decoder_block_apply.1} parent=5 // pred_fallthru
      _
    %p249 = scmp.lt.s32.totalorder %s14, 2
    // Predicated region
    $region41: #{_decoder_block_apply.1} parent=5 // pred_check
      %p250 = pneg %p249
    $region42: #{_decoder_block_apply.1} parent=5 // pred_check_branch
      %252 = sbr.rel (%p250) target = $region44
    $region43: #{_decoder_block_apply.1} parent=5 // pred_region
      // Predicated region
      $region45: #{_decoder_block_apply.1} parent=43 // pred_check
        %p253 = pneg %p34
      $region46: #{_decoder_block_apply.1} parent=43 // pred_check_branch
        %255 = sbr.rel (%p253) target = $region48
      $region47: #{_decoder_block_apply.1} parent=43 // pred_region
        %p256 = scmp.lt.s32.totalorder %s14, 1
        %s257 = scalar_select %p256, %s14, 1
        %s258 = smul.addr %s257, 8
        %s259 = smul.addr %s258, 4
        %s260 = scalar_lea.vmem %s0, %s259
      $region48: #{_decoder_block_apply.1} parent=43 // pred_fallthru
        _
    $region44: #{_decoder_block_apply.1} parent=5 // pred_fallthru
      _
    %p261 = scmp.le.s32.totalorder 1, %s14
    %p262 = scmp.lt.s32.totalorder %s14, 3
    %p263 = pnand %p261, %p262
    %p264 = pneg %p263
    // Predicated region
    $region49: #{_decoder_block_apply.1} parent=5 // pred_check
      _
    $region50: #{_decoder_block_apply.1} parent=5 // pred_check_branch
      %266 = sbr.rel (%p263) target = $region52
    $region51: #{_decoder_block_apply.1} parent=5 // pred_region
      %s267 = ssub.s32 %s14, 1
      %p268 = scmp.lt.s32.totalorder %s19, 1
      %s269 = scalar_select %p268, %s19, 1
      %s270 = smul.addr %s269, 8
      %s271 = smul.addr %s270, 4
      %s272 = scalar_lea.vmem %s0, %s271
      %p273 = pneg %p40
      %p274 = pneg %p37
      %p275 = pneg %p61
      %p276 = pneg %p58
      %p277 = pneg %p82
      %p278 = pneg %p79
      %p279 = pneg %p103
      %p280 = pneg %p100
      %p281 = pneg %p124
      %p282 = pneg %p121
      %p283 = pneg %p145
      %p284 = pneg %p142
      %p285 = pneg %p166
      %p286 = pneg %p163
      %p287 = pneg %p187
      %p288 = pneg %p184
      %p289 = pneg %p213
      %p290 = pneg %p210
      %p291 = scmp.lt.s32.totalorder %s19, 1
      %s292 = scalar_select %p291, %s19, 1
      %s293 = smul.addr %s292, 2
      %s294 = smul.addr %s293, 8
      %s295 = scalar_lea.vmem %s8, %s294
      %p296 = scmp.lt.s32.totalorder %s19, 1
      %s297 = scalar_select %p296, %s19, 1
      %s298 = smul.addr %s297, 8
      %s299 = smul.addr %s298, 4
      %s300 = scalar_lea.vmem %s0, %s299
      %p301 = scmp.lt.s32.totalorder %s19, 1
      %s302 = scalar_select %p301, %s19, 1
      %s303 = smul.addr %s302, 2
      %s304 = smul.addr %s303, 8
      %s305 = scalar_lea.vmem %s8, %s304
      %307 = vst [vmem:[#allocation2] sm:$0xf] 0
      %vm308 = vcmask 1043712
      %309 = vst.msk [vmem:[#allocation2 + $0xc] sm:$0xf] %vm308, 0
      %v310 = vld [vmem:[%s1] sm:$0x7]
      %v311 = vld [vmem:[%s2] sm:$0xf]
      %v312 = vld [vmem:[%s300] sm:$0xff]
      %v313 = vld [vmem:[%s300 + $0x8] sm:$0xff]
      %v314 = vld [vmem:[%s300 + $0x10] sm:$0xff]
      %v315 = vld [vmem:[%s300 + $0x18] sm:$0xff]
      %s316 = scalar_lea.vmem %s2, 4
      %v317 = vld [vmem:[%s316] sm:$0xf]
      %v322 = vunpack.c.l.b16 %v312
      %v323 = vunpack.c.h.b16 %v312
      %v324 = vunpack.c.l.b16 %v313
      %v325 = vunpack.c.h.b16 %v313
      %v326 = vunpack.c.l.b16 %v314
      %v327 = vunpack.c.h.b16 %v314
      %v328 = vunpack.c.l.b16 %v315
      %v329 = vunpack.c.h.b16 %v315
      %v330 = vpack.c.b16 %v326, %v322
      %v331 = vpack.c.b16 %v327, %v323
      %v332 = vpack.c.b16 %v328, %v324
      %v333 = vpack.c.b16 %v329, %v325
      %334 = vrot.lane.b32.xlu0 %v330, 18
      %v335 = vpop.permute.xlu0 %334
      %336 = vrot.lane.b32.xlu0 %v331, 18
      %v337 = vpop.permute.xlu0 %336
      %338 = vrot.lane.b32.xlu0 %v332, 18
      %v339 = vpop.permute.xlu0 %338
      %340 = vrot.lane.b32.xlu0 %v333, 18
      %v341 = vpop.permute.xlu0 %340
      %vm342 = vcmask 146432
      %v343 = vsel %vm342, %v335, %v337
      %v344 = vsel %vm342, %v337, %v339
      %v345 = vsel %vm342, %v339, %v341
      %vm349 = vcmask 130048
      %v351 = vsel %vm349, %v317, 0
      %353 = vmatpush.bf16.msra.mxu0 0
      %354 = vmatpush.bf16.msra.mxu0 0
      %355 = vmatpush.bf16.msra.mxu0 0
      %356 = vmatpush.bf16.msra.mxu0 0
      %357 = vmatpush.bf16.msra.mxu0 0
      %358 = vmatpush.bf16.msra.mxu0 0
      %359 = vmatpush.bf16.msra.mxu0 0
      %360 = vmatpush.bf16.msra.mxu0 %v343
      %361 = vmatmul.bf16.gmra.mxu0 %v351
      %v362 = vpop.f32.mrf.mxu0
      %v363 = vadd.f32 0.0, %v362
      %v364 = vpop.f32.mrf.mxu0
      %365 = vdwg.mxu0
      %366 = vmatpush.bf16.msra.mxu0 0
      %367 = vmatpush.bf16.msra.mxu0 0
      %368 = vmatpush.bf16.msra.mxu0 0
      %369 = vmatpush.bf16.msra.mxu0 0
      %370 = vmatpush.bf16.msra.mxu0 0
      %371 = vmatpush.bf16.msra.mxu0 0
      %372 = vmatpush.bf16.msra.mxu0 0
      %373 = vmatpush.bf16.msra.mxu0 %v344
      %374 = vmatmul.bf16.gmra.mxu0 %v351
      %v375 = vpop.f32.mrf.mxu0
      %v376 = vadd.f32 0.0, %v375
      %v377 = vpop.f32.mrf.mxu0
      %378 = vdwg.mxu0
      %379 = vmatpush.bf16.msra.mxu0 0
      %380 = vmatpush.bf16.msra.mxu0 0
      %381 = vmatpush.bf16.msra.mxu0 0
      %382 = vmatpush.bf16.msra.mxu0 0
      %383 = vmatpush.bf16.msra.mxu0 0
      %384 = vmatpush.bf16.msra.mxu0 0
      %385 = vmatpush.bf16.msra.mxu0 0
      %386 = vmatpush.bf16.msra.mxu0 %v345
      %387 = vmatmul.bf16.gmra.mxu0 %v351
      %v388 = vpop.f32.mrf.mxu0
      %v389 = vadd.f32 0.0, %v388
      %v390 = vpop.f32.mrf.mxu0
      %391 = vdwg.mxu0
      %392 = vrot.lane.b32.xlu0 %v330, 19
      %v393 = vpop.permute.xlu0 %392
      %394 = vrot.lane.b32.xlu0 %v331, 19
      %v395 = vpop.permute.xlu0 %394
      %396 = vrot.lane.b32.xlu0 %v332, 19
      %v397 = vpop.permute.xlu0 %396
      %398 = vrot.lane.b32.xlu0 %v333, 19
      %v399 = vpop.permute.xlu0 %398
      %vm400 = vcmask 154624
      %v401 = vsel %vm400, %v393, %v395
      %v402 = vsel %vm400, %v395, %v397
      %v403 = vsel %vm400, %v397, %v399
      %v408 = vsel %vm349, %v311, 0
      %410 = vmatpush.bf16.msra.mxu0 0
      %411 = vmatpush.bf16.msra.mxu0 0
      %412 = vmatpush.bf16.msra.mxu0 0
      %413 = vmatpush.bf16.msra.mxu0 0
      %414 = vmatpush.bf16.msra.mxu0 0
      %415 = vmatpush.bf16.msra.mxu0 0
      %416 = vmatpush.bf16.msra.mxu0 0
      %417 = vmatpush.bf16.msra.mxu0 %v401
      %418 = vmatmul.bf16.gmra.mxu0 %v408
      %v419 = vpop.f32.mrf.mxu0
      %v420 = vadd.f32 %v363, %v419
      %v421 = vpop.f32.mrf.mxu0
      %422 = vdwg.mxu0
      %423 = vmatpush.bf16.msra.mxu0 0
      %424 = vmatpush.bf16.msra.mxu0 0
      %425 = vmatpush.bf16.msra.mxu0 0
      %426 = vmatpush.bf16.msra.mxu0 0
      %427 = vmatpush.bf16.msra.mxu0 0
      %428 = vmatpush.bf16.msra.mxu0 0
      %429 = vmatpush.bf16.msra.mxu0 0
      %430 = vmatpush.bf16.msra.mxu0 %v402
      %431 = vmatmul.bf16.gmra.mxu0 %v408
      %v432 = vpop.f32.mrf.mxu0
      %v433 = vadd.f32 %v376, %v432
      %v434 = vpop.f32.mrf.mxu0
      %435 = vdwg.mxu0
      %436 = vmatpush.bf16.msra.mxu0 0
      %437 = vmatpush.bf16.msra.mxu0 0
      %438 = vmatpush.bf16.msra.mxu0 0
      %439 = vmatpush.bf16.msra.mxu0 0
      %440 = vmatpush.bf16.msra.mxu0 0
      %441 = vmatpush.bf16.msra.mxu0 0
      %442 = vmatpush.bf16.msra.mxu0 0
      %443 = vmatpush.bf16.msra.mxu0 %v403
      %444 = vmatmul.bf16.gmra.mxu0 %v408
      %v445 = vpop.f32.mrf.mxu0
      %v446 = vadd.f32 %v389, %v445
      %v447 = vpop.f32.mrf.mxu0
      %448 = vdwg.mxu0
      %s449 = scalar_lea.vmem %s2, 8
      %v450 = vld [vmem:[%s449] sm:$0xf]
      %451 = vrot.lane.b32.xlu0 %v330, 17
      %v452 = vpop.permute.xlu0 %451
      %453 = vrot.lane.b32.xlu0 %v331, 17
      %v454 = vpop.permute.xlu0 %453
      %455 = vrot.lane.b32.xlu0 %v332, 17
      %v456 = vpop.permute.xlu0 %455
      %457 = vrot.lane.b32.xlu0 %v333, 17
      %v458 = vpop.permute.xlu0 %457
      %vm459 = vcmask 138240
      %v460 = vsel %vm459, %v452, %v454
      %v461 = vsel %vm459, %v454, %v456
      %v462 = vsel %vm459, %v456, %v458
      %v467 = vsel %vm349, %v450, 0
      %469 = vmatpush.bf16.msra.mxu0 0
      %470 = vmatpush.bf16.msra.mxu0 0
      %471 = vmatpush.bf16.msra.mxu0 0
      %472 = vmatpush.bf16.msra.mxu0 0
      %473 = vmatpush.bf16.msra.mxu0 0
      %474 = vmatpush.bf16.msra.mxu0 0
      %475 = vmatpush.bf16.msra.mxu0 0
      %476 = vmatpush.bf16.msra.mxu0 %v460
      %477 = vmatmul.bf16.gmra.mxu0 %v467
      %v478 = vpop.f32.mrf.mxu0
      %v479 = vadd.f32 0.0, %v478
      %v480 = vpop.f32.mrf.mxu0
      %481 = vdwg.mxu0
      %482 = vmatpush.bf16.msra.mxu0 0
      %483 = vmatpush.bf16.msra.mxu0 0
      %484 = vmatpush.bf16.msra.mxu0 0
      %485 = vmatpush.bf16.msra.mxu0 0
      %486 = vmatpush.bf16.msra.mxu0 0
      %487 = vmatpush.bf16.msra.mxu0 0
      %488 = vmatpush.bf16.msra.mxu0 0
      %489 = vmatpush.bf16.msra.mxu0 %v461
      %490 = vmatmul.bf16.gmra.mxu0 %v467
      %v491 = vpop.f32.mrf.mxu0
      %v492 = vadd.f32 0.0, %v491
      %v493 = vpop.f32.mrf.mxu0
      %494 = vdwg.mxu0
      %495 = vmatpush.bf16.msra.mxu0 0
      %496 = vmatpush.bf16.msra.mxu0 0
      %497 = vmatpush.bf16.msra.mxu0 0
      %498 = vmatpush.bf16.msra.mxu0 0
      %499 = vmatpush.bf16.msra.mxu0 0
      %500 = vmatpush.bf16.msra.mxu0 0
      %501 = vmatpush.bf16.msra.mxu0 0
      %502 = vmatpush.bf16.msra.mxu0 %v462
      %503 = vmatmul.bf16.gmra.mxu0 %v467
      %v504 = vpop.f32.mrf.mxu0
      %v505 = vadd.f32 0.0, %v504
      %v506 = vpop.f32.mrf.mxu0
      %507 = vdwg.mxu0
      %v508 = vadd.f32 %v420, %v479
      %v509 = vadd.f32 %v433, %v492
      %v510 = vadd.f32 %v446, %v505
      %s511 = scalar_lea.vmem %s2, 12
      %v512 = vld [vmem:[%s511] sm:$0xf]
      %513 = vrot.lane.b32.xlu0 %v330, 1
      %v514 = vpop.permute.xlu0 %513
      %515 = vrot.lane.b32.xlu0 %v331, 1
      %v516 = vpop.permute.xlu0 %515
      %517 = vrot.lane.b32.xlu0 %v332, 1
      %v518 = vpop.permute.xlu0 %517
      %519 = vrot.lane.b32.xlu0 %v333, 1
      %v520 = vpop.permute.xlu0 %519
      %vm521 = vcmask 7168
      %v522 = vsel %vm521, %v514, %v516
      %v523 = vsel %vm521, %v516, %v518
      %v524 = vsel %vm521, %v518, %v520
      %v529 = vsel %vm349, %v512, 0
      %531 = vmatpush.bf16.msra.mxu0 0
      %532 = vmatpush.bf16.msra.mxu0 0
      %533 = vmatpush.bf16.msra.mxu0 0
      %534 = vmatpush.bf16.msra.mxu0 0
      %535 = vmatpush.bf16.msra.mxu0 0
      %536 = vmatpush.bf16.msra.mxu0 0
      %537 = vmatpush.bf16.msra.mxu0 0
      %538 = vmatpush.bf16.msra.mxu0 %v522
      %539 = vmatmul.bf16.gmra.mxu0 %v529
      %v540 = vpop.f32.mrf.mxu0
      %v541 = vadd.f32 0.0, %v540
      %v542 = vpop.f32.mrf.mxu0
      %543 = vdwg.mxu0
      %544 = vmatpush.bf16.msra.mxu0 0
      %545 = vmatpush.bf16.msra.mxu0 0
      %546 = vmatpush.bf16.msra.mxu0 0
      %547 = vmatpush.bf16.msra.mxu0 0
      %548 = vmatpush.bf16.msra.mxu0 0
      %549 = vmatpush.bf16.msra.mxu0 0
      %550 = vmatpush.bf16.msra.mxu0 0
      %551 = vmatpush.bf16.msra.mxu0 %v523
      %552 = vmatmul.bf16.gmra.mxu0 %v529
      %v553 = vpop.f32.mrf.mxu0
      %v554 = vadd.f32 0.0, %v553
      %v555 = vpop.f32.mrf.mxu0
      %556 = vdwg.mxu0
      %557 = vmatpush.bf16.msra.mxu0 0
      %558 = vmatpush.bf16.msra.mxu0 0
      %559 = vmatpush.bf16.msra.mxu0 0
      %560 = vmatpush.bf16.msra.mxu0 0
      %561 = vmatpush.bf16.msra.mxu0 0
      %562 = vmatpush.bf16.msra.mxu0 0
      %563 = vmatpush.bf16.msra.mxu0 0
      %564 = vmatpush.bf16.msra.mxu0 %v524
      %565 = vmatmul.bf16.gmra.mxu0 %v529
      %v566 = vpop.f32.mrf.mxu0
      %v567 = vadd.f32 0.0, %v566
      %v568 = vpop.f32.mrf.mxu0
      %569 = vdwg.mxu0
      %v570 = vadd.f32 %v508, %v541
      %v571 = vadd.f32 %v509, %v554
      %v572 = vadd.f32 %v510, %v567
      %s573 = scalar_lea.vmem %s2, 16
      %v574 = vld [vmem:[%s573] sm:$0xf]
      %v575 = vld [vmem:[%s300 + $0x4] sm:$0xff]
      %v576 = vld [vmem:[%s300 + $0xc] sm:$0xf]
      %v577 = vld [vmem:[%s300 + $0x14] sm:$0xff]
      %v578 = vld [vmem:[%s300 + $0x1c] sm:$0xf]
      %v583 = vunpack.c.l.b16 %v575
      %v584 = vunpack.c.h.b16 %v575
      %v585 = vunpack.c.l.b16 %v576
      %v586 = vunpack.c.l.b16 %v577
      %v587 = vunpack.c.h.b16 %v577
      %v588 = vunpack.c.l.b16 %v578
      %v589 = vpack.c.b16 %v586, %v583
      %v590 = vpack.c.b16 %v587, %v584
      %v591 = vpack.c.b16 %v588, %v585
      %v596 = vsel %vm349, %v574, 0
      %598 = vmatpush.bf16.msra.mxu0 0
      %599 = vmatpush.bf16.msra.mxu0 0
      %600 = vmatpush.bf16.msra.mxu0 0
      %601 = vmatpush.bf16.msra.mxu0 0
      %602 = vmatpush.bf16.msra.mxu0 0
      %603 = vmatpush.bf16.msra.mxu0 0
      %604 = vmatpush.bf16.msra.mxu0 0
      %605 = vmatpush.bf16.msra.mxu0 %v589
      %606 = vmatmul.bf16.gmra.mxu0 %v596
      %v607 = vpop.f32.mrf.mxu0
      %v608 = vadd.f32 0.0, %v607
      %v609 = vpop.f32.mrf.mxu0
      %610 = vdwg.mxu0
      %611 = vmatpush.bf16.msra.mxu0 0
      %612 = vmatpush.bf16.msra.mxu0 0
      %613 = vmatpush.bf16.msra.mxu0 0
      %614 = vmatpush.bf16.msra.mxu0 0
      %615 = vmatpush.bf16.msra.mxu0 0
      %616 = vmatpush.bf16.msra.mxu0 0
      %617 = vmatpush.bf16.msra.mxu0 0
      %618 = vmatpush.bf16.msra.mxu0 %v590
      %619 = vmatmul.bf16.gmra.mxu0 %v596
      %v620 = vpop.f32.mrf.mxu0
      %v621 = vadd.f32 0.0, %v620
      %v622 = vpop.f32.mrf.mxu0
      %623 = vdwg.mxu0
      %624 = vmatpush.bf16.msra.mxu0 0
      %625 = vmatpush.bf16.msra.mxu0 0
      %626 = vmatpush.bf16.msra.mxu0 0
      %627 = vmatpush.bf16.msra.mxu0 0
      %628 = vmatpush.bf16.msra.mxu0 0
      %629 = vmatpush.bf16.msra.mxu0 0
      %630 = vmatpush.bf16.msra.mxu0 0
      %631 = vmatpush.bf16.msra.mxu0 %v591
      %632 = vmatmul.bf16.gmra.mxu0 %v596
      %v633 = vpop.f32.mrf.mxu0
      %v634 = vadd.f32 0.0, %v633
      %v635 = vpop.f32.mrf.mxu0
      %636 = vdwg.mxu0
      %v637 = vadd.f32 %v570, %v608
      %v638 = vadd.f32 %v571, %v621
      %v639 = vadd.f32 %v572, %v634
      %s640 = scalar_lea.vmem %s2, 20
      %v641 = vld [vmem:[%s640] sm:$0xf]
      %642 = vrot.lane.b32.xlu0 %v589, 127
      %v643 = vpop.permute.xlu0 %642
      %644 = vrot.lane.b32.xlu0 %v590, 127
      %v645 = vpop.permute.xlu0 %644
      %646 = vrot.lane.b32.xlu0 %v591, 127
      %v647 = vpop.permute.xlu0 %646
      %vm648 = vcmask 1039360
      %v649 = vsel %vm648, %v643, %v645
      %v650 = vsel %vm648, %v645, %v647
      %v655 = vsel %vm349, %v641, 0
      %657 = vmatpush.bf16.msra.mxu0 0
      %658 = vmatpush.bf16.msra.mxu0 0
      %659 = vmatpush.bf16.msra.mxu0 0
      %660 = vmatpush.bf16.msra.mxu0 0
      %661 = vmatpush.bf16.msra.mxu0 0
      %662 = vmatpush.bf16.msra.mxu0 0
      %663 = vmatpush.bf16.msra.mxu0 0
      %664 = vmatpush.bf16.msra.mxu0 %v649
      %665 = vmatmul.bf16.gmra.mxu0 %v655
      %v666 = vpop.f32.mrf.mxu0
      %v667 = vadd.f32 0.0, %v666
      %v668 = vpop.f32.mrf.mxu0
      %669 = vdwg.mxu0
      %670 = vmatpush.bf16.msra.mxu0 0
      %671 = vmatpush.bf16.msra.mxu0 0
      %672 = vmatpush.bf16.msra.mxu0 0
      %673 = vmatpush.bf16.msra.mxu0 0
      %674 = vmatpush.bf16.msra.mxu0 0
      %675 = vmatpush.bf16.msra.mxu0 0
      %676 = vmatpush.bf16.msra.mxu0 0
      %677 = vmatpush.bf16.msra.mxu0 %v650
      %678 = vmatmul.bf16.gmra.mxu0 %v655
      %v679 = vpop.f32.mrf.mxu0
      %v680 = vadd.f32 0.0, %v679
      %v681 = vpop.f32.mrf.mxu0
      %682 = vdwg.mxu0
      %683 = vmatpush.bf16.msra.mxu0 0
      %684 = vmatpush.bf16.msra.mxu0 0
      %685 = vmatpush.bf16.msra.mxu0 0
      %686 = vmatpush.bf16.msra.mxu0 0
      %687 = vmatpush.bf16.msra.mxu0 0
      %688 = vmatpush.bf16.msra.mxu0 0
      %689 = vmatpush.bf16.msra.mxu0 0
      %690 = vmatpush.bf16.msra.mxu0 %v647
      %691 = vmatmul.bf16.gmra.mxu0 %v655
      %v692 = vpop.f32.mrf.mxu0
      %v693 = vadd.f32 0.0, %v692
      %v694 = vpop.f32.mrf.mxu0
      %695 = vdwg.mxu0
      %v696 = vadd.f32 %v637, %v667
      %v697 = vadd.f32 %v638, %v680
      %v698 = vadd.f32 %v639, %v693
      %s699 = scalar_lea.vmem %s2, 24
      %v700 = vld [vmem:[%s699] sm:$0xf]
      %701 = vrot.lane.b32.xlu0 %v589, 111
      %v702 = vpop.permute.xlu0 %701
      %703 = vrot.lane.b32.xlu0 %v590, 111
      %v704 = vpop.permute.xlu0 %703
      %705 = vrot.lane.b32.xlu0 %v591, 111
      %v706 = vpop.permute.xlu0 %705
      %vm707 = vcmask 908288
      %v708 = vsel %vm707, %v702, %v704
      %v709 = vsel %vm707, %v704, %v706
      %v714 = vsel %vm349, %v700, 0
      %716 = vmatpush.bf16.msra.mxu0 0
      %717 = vmatpush.bf16.msra.mxu0 0
      %718 = vmatpush.bf16.msra.mxu0 0
      %719 = vmatpush.bf16.msra.mxu0 0
      %720 = vmatpush.bf16.msra.mxu0 0
      %721 = vmatpush.bf16.msra.mxu0 0
      %722 = vmatpush.bf16.msra.mxu0 0
      %723 = vmatpush.bf16.msra.mxu0 %v708
      %724 = vmatmul.bf16.gmra.mxu0 %v714
      %v725 = vpop.f32.mrf.mxu0
      %v726 = vadd.f32 0.0, %v725
      %v727 = vpop.f32.mrf.mxu0
      %728 = vdwg.mxu0
      %729 = vmatpush.bf16.msra.mxu0 0
      %730 = vmatpush.bf16.msra.mxu0 0
      %731 = vmatpush.bf16.msra.mxu0 0
      %732 = vmatpush.bf16.msra.mxu0 0
      %733 = vmatpush.bf16.msra.mxu0 0
      %734 = vmatpush.bf16.msra.mxu0 0
      %735 = vmatpush.bf16.msra.mxu0 0
      %736 = vmatpush.bf16.msra.mxu0 %v709
      %737 = vmatmul.bf16.gmra.mxu0 %v714
      %v738 = vpop.f32.mrf.mxu0
      %v739 = vadd.f32 0.0, %v738
      %v740 = vpop.f32.mrf.mxu0
      %741 = vdwg.mxu0
      %742 = vmatpush.bf16.msra.mxu0 0
      %743 = vmatpush.bf16.msra.mxu0 0
      %744 = vmatpush.bf16.msra.mxu0 0
      %745 = vmatpush.bf16.msra.mxu0 0
      %746 = vmatpush.bf16.msra.mxu0 0
      %747 = vmatpush.bf16.msra.mxu0 0
      %748 = vmatpush.bf16.msra.mxu0 0
      %749 = vmatpush.bf16.msra.mxu0 %v706
      %750 = vmatmul.bf16.gmra.mxu0 %v714
      %v751 = vpop.f32.mrf.mxu0
      %v752 = vadd.f32 0.0, %v751
      %v753 = vpop.f32.mrf.mxu0
      %754 = vdwg.mxu0
      %v755 = vadd.f32 %v696, %v726
      %v756 = vadd.f32 %v697, %v739
      %v757 = vadd.f32 %v698, %v752
      %s758 = scalar_lea.vmem %s2, 28
      %v759 = vld [vmem:[%s758] sm:$0xf]
      %760 = vrot.lane.b32.xlu0 %v589, 110
      %v761 = vpop.permute.xlu0 %760
      %762 = vrot.lane.b32.xlu0 %v590, 110
      %v763 = vpop.permute.xlu0 %762
      %764 = vrot.lane.b32.xlu0 %v591, 110
      %v765 = vpop.permute.xlu0 %764
      %vm766 = vcmask 900096
      %v767 = vsel %vm766, %v761, %v763
      %v768 = vsel %vm766, %v763, %v765
      %v773 = vsel %vm349, %v759, 0
      %775 = vmatpush.bf16.msra.mxu0 0
      %776 = vmatpush.bf16.msra.mxu0 0
      %777 = vmatpush.bf16.msra.mxu0 0
      %778 = vmatpush.bf16.msra.mxu0 0
      %779 = vmatpush.bf16.msra.mxu0 0
      %780 = vmatpush.bf16.msra.mxu0 0
      %781 = vmatpush.bf16.msra.mxu0 0
      %782 = vmatpush.bf16.msra.mxu0 %v767
      %783 = vmatmul.bf16.gmra.mxu0 %v773
      %v784 = vpop.f32.mrf.mxu0
      %v785 = vadd.f32 0.0, %v784
      %v786 = vpop.f32.mrf.mxu0
      %787 = vdwg.mxu0
      %788 = vmatpush.bf16.msra.mxu0 0
      %789 = vmatpush.bf16.msra.mxu0 0
      %790 = vmatpush.bf16.msra.mxu0 0
      %791 = vmatpush.bf16.msra.mxu0 0
      %792 = vmatpush.bf16.msra.mxu0 0
      %793 = vmatpush.bf16.msra.mxu0 0
      %794 = vmatpush.bf16.msra.mxu0 0
      %795 = vmatpush.bf16.msra.mxu0 %v768
      %796 = vmatmul.bf16.gmra.mxu0 %v773
      %v797 = vpop.f32.mrf.mxu0
      %v798 = vadd.f32 0.0, %v797
      %v799 = vpop.f32.mrf.mxu0
      %800 = vdwg.mxu0
      %801 = vmatpush.bf16.msra.mxu0 0
      %802 = vmatpush.bf16.msra.mxu0 0
      %803 = vmatpush.bf16.msra.mxu0 0
      %804 = vmatpush.bf16.msra.mxu0 0
      %805 = vmatpush.bf16.msra.mxu0 0
      %806 = vmatpush.bf16.msra.mxu0 0
      %807 = vmatpush.bf16.msra.mxu0 0
      %808 = vmatpush.bf16.msra.mxu0 %v765
      %809 = vmatmul.bf16.gmra.mxu0 %v773
      %v810 = vpop.f32.mrf.mxu0
      %v811 = vadd.f32 0.0, %v810
      %v812 = vpop.f32.mrf.mxu0
      %813 = vdwg.mxu0
      %v814 = vadd.f32 %v755, %v785
      %v815 = vadd.f32 %v756, %v798
      %v816 = vadd.f32 %v757, %v811
      %s817 = scalar_lea.vmem %s2, 32
      %v818 = vld [vmem:[%s817] sm:$0xf]
      %819 = vrot.lane.b32.xlu0 %v589, 109
      %v820 = vpop.permute.xlu0 %819
      %821 = vrot.lane.b32.xlu0 %v590, 109
      %v822 = vpop.permute.xlu0 %821
      %823 = vrot.lane.b32.xlu0 %v591, 109
      %v824 = vpop.permute.xlu0 %823
      %vm825 = vcmask 891904
      %v826 = vsel %vm825, %v820, %v822
      %v827 = vsel %vm825, %v822, %v824
      %v832 = vsel %vm349, %v818, 0
      %834 = vmatpush.bf16.msra.mxu0 0
      %835 = vmatpush.bf16.msra.mxu0 0
      %836 = vmatpush.bf16.msra.mxu0 0
      %837 = vmatpush.bf16.msra.mxu0 0
      %838 = vmatpush.bf16.msra.mxu0 0
      %839 = vmatpush.bf16.msra.mxu0 0
      %840 = vmatpush.bf16.msra.mxu0 0
      %841 = vmatpush.bf16.msra.mxu0 %v826
      %842 = vmatmul.bf16.gmra.mxu0 %v832
      %v843 = vpop.f32.mrf.mxu0
      %v844 = vadd.f32 0.0, %v843
      %v845 = vpop.f32.mrf.mxu0
      %846 = vdwg.mxu0
      %847 = vmatpush.bf16.msra.mxu0 0
      %848 = vmatpush.bf16.msra.mxu0 0
      %849 = vmatpush.bf16.msra.mxu0 0
      %850 = vmatpush.bf16.msra.mxu0 0
      %851 = vmatpush.bf16.msra.mxu0 0
      %852 = vmatpush.bf16.msra.mxu0 0
      %853 = vmatpush.bf16.msra.mxu0 0
      %854 = vmatpush.bf16.msra.mxu0 %v827
      %855 = vmatmul.bf16.gmra.mxu0 %v832
      %v856 = vpop.f32.mrf.mxu0
      %v857 = vadd.f32 0.0, %v856
      %v858 = vpop.f32.mrf.mxu0
      %859 = vdwg.mxu0
      %860 = vmatpush.bf16.msra.mxu0 0
      %861 = vmatpush.bf16.msra.mxu0 0
      %862 = vmatpush.bf16.msra.mxu0 0
      %863 = vmatpush.bf16.msra.mxu0 0
      %864 = vmatpush.bf16.msra.mxu0 0
      %865 = vmatpush.bf16.msra.mxu0 0
      %866 = vmatpush.bf16.msra.mxu0 0
      %867 = vmatpush.bf16.msra.mxu0 %v824
      %868 = vmatmul.bf16.gmra.mxu0 %v832
      %v869 = vpop.f32.mrf.mxu0
      %v870 = vadd.f32 0.0, %v869
      %v871 = vpop.f32.mrf.mxu0
      %872 = vdwg.mxu0
      %v873 = vadd.f32 %v814, %v844
      %v874 = vadd.f32 %v815, %v857
      %v875 = vadd.f32 %v816, %v870
      %v876 = vld [vmem:[%s3] sm:$0xff]
      %878 = vset.pattern.permute.xlu0 0
      %879 = vperm.xlu0 %878, %v876
      %v880 = vpop.permute.xlu0 %879
      %v882 = vadd.f32 %v873, %v880
      %v883 = vadd.f32 %v874, %v880
      %v884 = vadd.f32 %v875, %v880
      %v885 = vmax.f32 %v882, 0.0
      %v886 = vmax.f32 %v883, 0.0
      %v887 = vmax.f32 %v884, 0.0
      %v889 = vperm.slane %v310, 0
      %v890 = vperm.slane %v310, 1
      %v891 = vperm.slane %v310, 2
      %v895 = vmul.f32 %v885, %v889
      %v896 = vmul.f32 %v886, %v890
      %v897 = vmul.f32 %v887, %v891
      %v898 = vpack.c.bf16 %v896, %v895
      %v899 = vpack.c.bf16 %v897, %v897
      %900 = vst [vmem:[#allocation2 + $0x4] sm:$0xff] %v898
      %vm901 = vcmask 257024
      %902 = vst.msk [vmem:[#allocation2 + $0xc] sm:$0xf] %vm901, %v899
      %v903 = vld [vmem:[%s4] sm:$0xf]
      %v904 = vld [vmem:[#allocation2] sm:$0xff]
      %v905 = vld [vmem:[#allocation2 + $0x8] sm:$0xff]
      %s906 = scalar_lea.vmem %s4, 4
      %v907 = vld [vmem:[%s906] sm:$0xf]
      %v910 = vunpack.c.l.b16 %v904
      %v911 = vunpack.c.h.b16 %v904
      %v912 = vunpack.c.l.b16 %v905
      %v913 = vunpack.c.h.b16 %v905
      %v914 = vpack.c.b16 %v910, %v910
      %v915 = vpack.c.b16 %v911, %v911
      %v916 = vpack.c.b16 %v912, %v912
      %v917 = vpack.c.b16 %v913, %v913
      %918 = vrot.lane.b32.xlu0 %v914, 18
      %v919 = vpop.permute.xlu0 %918
      %920 = vrot.lane.b32.xlu0 %v915, 18
      %v921 = vpop.permute.xlu0 %920
      %922 = vrot.lane.b32.xlu0 %v916, 18
      %v923 = vpop.permute.xlu0 %922
      %924 = vrot.lane.b32.xlu0 %v917, 18
      %v925 = vpop.permute.xlu0 %924
      %v926 = vsel %vm342, %v919, %v921
      %v927 = vsel %vm342, %v921, %v923
      %v928 = vsel %vm342, %v923, %v925
      %vm929 = vcmask 64512
      %v931 = vsel %vm929, %v907, 0
      %vm933 = vcmask 1043456
      %v935 = vsel %vm933, %v926, 0
      %v938 = vsel %vm933, %v927, 0
      %v941 = vsel %vm933, %v928, 0
      %943 = vmatpush.bf16.msra.mxu0 0
      %944 = vmatpush.bf16.msra.mxu0 0
      %945 = vmatpush.bf16.msra.mxu0 0
      %946 = vmatpush.bf16.msra.mxu0 0
      %947 = vmatpush.bf16.msra.mxu0 0
      %948 = vmatpush.bf16.msra.mxu0 0
      %949 = vmatpush.bf16.msra.mxu0 0
      %950 = vmatpush.bf16.msra.mxu0 %v935
      %951 = vmatmul.bf16.gmra.mxu0 %v931
      %v952 = vpop.f32.mrf.mxu0
      %v953 = vadd.f32 0.0, %v952
      %v954 = vpop.f32.mrf.mxu0
      %955 = vdwg.mxu0
      %956 = vmatpush.bf16.msra.mxu0 0
      %957 = vmatpush.bf16.msra.mxu0 0
      %958 = vmatpush.bf16.msra.mxu0 0
      %959 = vmatpush.bf16.msra.mxu0 0
      %960 = vmatpush.bf16.msra.mxu0 0
      %961 = vmatpush.bf16.msra.mxu0 0
      %962 = vmatpush.bf16.msra.mxu0 0
      %963 = vmatpush.bf16.msra.mxu0 %v938
      %964 = vmatmul.bf16.gmra.mxu0 %v931
      %v965 = vpop.f32.mrf.mxu0
      %v966 = vadd.f32 0.0, %v965
      %v967 = vpop.f32.mrf.mxu0
      %968 = vdwg.mxu0
      %969 = vmatpush.bf16.msra.mxu0 0
      %970 = vmatpush.bf16.msra.mxu0 0
      %971 = vmatpush.bf16.msra.mxu0 0
      %972 = vmatpush.bf16.msra.mxu0 0
      %973 = vmatpush.bf16.msra.mxu0 0
      %974 = vmatpush.bf16.msra.mxu0 0
      %975 = vmatpush.bf16.msra.mxu0 0
      %976 = vmatpush.bf16.msra.mxu0 %v941
      %977 = vmatmul.bf16.gmra.mxu0 %v931
      %v978 = vpop.f32.mrf.mxu0
      %v979 = vadd.f32 0.0, %v978
      %v980 = vpop.f32.mrf.mxu0
      %981 = vdwg.mxu0
      %982 = vrot.lane.b32.xlu0 %v914, 19
      %v983 = vpop.permute.xlu0 %982
      %984 = vrot.lane.b32.xlu0 %v915, 19
      %v985 = vpop.permute.xlu0 %984
      %986 = vrot.lane.b32.xlu0 %v916, 19
      %v987 = vpop.permute.xlu0 %986
      %988 = vrot.lane.b32.xlu0 %v917, 19
      %v989 = vpop.permute.xlu0 %988
      %v990 = vsel %vm400, %v983, %v985
      %v991 = vsel %vm400, %v985, %v987
      %v992 = vsel %vm400, %v987, %v989
      %v994 = vsel %vm929, %v903, 0
      %v997 = vsel %vm933, %v990, 0
      %v1000 = vsel %vm933, %v991, 0
      %v1003 = vsel %vm933, %v992, 0
      %1005 = vmatpush.bf16.msra.mxu0 0
      %1006 = vmatpush.bf16.msra.mxu0 0
      %1007 = vmatpush.bf16.msra.mxu0 0
      %1008 = vmatpush.bf16.msra.mxu0 0
      %1009 = vmatpush.bf16.msra.mxu0 0
      %1010 = vmatpush.bf16.msra.mxu0 0
      %1011 = vmatpush.bf16.msra.mxu0 0
      %1012 = vmatpush.bf16.msra.mxu0 %v997
      %1013 = vmatmul.bf16.gmra.mxu0 %v994
      %v1014 = vpop.f32.mrf.mxu0
      %v1015 = vadd.f32 %v953, %v1014
      %v1016 = vpop.f32.mrf.mxu0
      %1017 = vdwg.mxu0
      %1018 = vmatpush.bf16.msra.mxu0 0
      %1019 = vmatpush.bf16.msra.mxu0 0
      %1020 = vmatpush.bf16.msra.mxu0 0
      %1021 = vmatpush.bf16.msra.mxu0 0
      %1022 = vmatpush.bf16.msra.mxu0 0
      %1023 = vmatpush.bf16.msra.mxu0 0
      %1024 = vmatpush.bf16.msra.mxu0 0
      %1025 = vmatpush.bf16.msra.mxu0 %v1000
      %1026 = vmatmul.bf16.gmra.mxu0 %v994
      %v1027 = vpop.f32.mrf.mxu0
      %v1028 = vadd.f32 %v966, %v1027
      %v1029 = vpop.f32.mrf.mxu0
      %1030 = vdwg.mxu0
      %1031 = vmatpush.bf16.msra.mxu0 0
      %1032 = vmatpush.bf16.msra.mxu0 0
      %1033 = vmatpush.bf16.msra.mxu0 0
      %1034 = vmatpush.bf16.msra.mxu0 0
      %1035 = vmatpush.bf16.msra.mxu0 0
      %1036 = vmatpush.bf16.msra.mxu0 0
      %1037 = vmatpush.bf16.msra.mxu0 0
      %1038 = vmatpush.bf16.msra.mxu0 %v1003
      %1039 = vmatmul.bf16.gmra.mxu0 %v994
      %v1040 = vpop.f32.mrf.mxu0
      %v1041 = vadd.f32 %v979, %v1040
      %v1042 = vpop.f32.mrf.mxu0
      %1043 = vdwg.mxu0
      %s1044 = scalar_lea.vmem %s4, 8
      %v1045 = vld [vmem:[%s1044] sm:$0xf]
      %1046 = vrot.lane.b32.xlu0 %v914, 17
      %v1047 = vpop.permute.xlu0 %1046
      %1048 = vrot.lane.b32.xlu0 %v915, 17
      %v1049 = vpop.permute.xlu0 %1048
      %1050 = vrot.lane.b32.xlu0 %v916, 17
      %v1051 = vpop.permute.xlu0 %1050
      %1052 = vrot.lane.b32.xlu0 %v917, 17
      %v1053 = vpop.permute.xlu0 %1052
      %v1054 = vsel %vm459, %v1047, %v1049
      %v1055 = vsel %vm459, %v1049, %v1051
      %v1056 = vsel %vm459, %v1051, %v1053
      %v1058 = vsel %vm929, %v1045, 0
      %v1061 = vsel %vm933, %v1054, 0
      %v1064 = vsel %vm933, %v1055, 0
      %v1067 = vsel %vm933, %v1056, 0
      %1069 = vmatpush.bf16.msra.mxu0 0
      %1070 = vmatpush.bf16.msra.mxu0 0
      %1071 = vmatpush.bf16.msra.mxu0 0
      %1072 = vmatpush.bf16.msra.mxu0 0
      %1073 = vmatpush.bf16.msra.mxu0 0
      %1074 = vmatpush.bf16.msra.mxu0 0
      %1075 = vmatpush.bf16.msra.mxu0 0
      %1076 = vmatpush.bf16.msra.mxu0 %v1061
      %1077 = vmatmul.bf16.gmra.mxu0 %v1058
      %v1078 = vpop.f32.mrf.mxu0
      %v1079 = vadd.f32 0.0, %v1078
      %v1080 = vpop.f32.mrf.mxu0
      %1081 = vdwg.mxu0
      %1082 = vmatpush.bf16.msra.mxu0 0
      %1083 = vmatpush.bf16.msra.mxu0 0
      %1084 = vmatpush.bf16.msra.mxu0 0
      %1085 = vmatpush.bf16.msra.mxu0 0
      %1086 = vmatpush.bf16.msra.mxu0 0
      %1087 = vmatpush.bf16.msra.mxu0 0
      %1088 = vmatpush.bf16.msra.mxu0 0
      %1089 = vmatpush.bf16.msra.mxu0 %v1064
      %1090 = vmatmul.bf16.gmra.mxu0 %v1058
      %v1091 = vpop.f32.mrf.mxu0
      %v1092 = vadd.f32 0.0, %v1091
      %v1093 = vpop.f32.mrf.mxu0
      %1094 = vdwg.mxu0
      %1095 = vmatpush.bf16.msra.mxu0 0
      %1096 = vmatpush.bf16.msra.mxu0 0
      %1097 = vmatpush.bf16.msra.mxu0 0
      %1098 = vmatpush.bf16.msra.mxu0 0
      %1099 = vmatpush.bf16.msra.mxu0 0
      %1100 = vmatpush.bf16.msra.mxu0 0
      %1101 = vmatpush.bf16.msra.mxu0 0
      %1102 = vmatpush.bf16.msra.mxu0 %v1067
      %1103 = vmatmul.bf16.gmra.mxu0 %v1058
      %v1104 = vpop.f32.mrf.mxu0
      %v1105 = vadd.f32 0.0, %v1104
      %v1106 = vpop.f32.mrf.mxu0
      %1107 = vdwg.mxu0
      %v1108 = vadd.f32 %v1015, %v1079
      %v1109 = vadd.f32 %v1028, %v1092
      %v1110 = vadd.f32 %v1041, %v1105
      %s1111 = scalar_lea.vmem %s4, 12
      %v1112 = vld [vmem:[%s1111] sm:$0xf]
      %1113 = vrot.lane.b32.xlu0 %v914, 1
      %v1114 = vpop.permute.xlu0 %1113
      %1115 = vrot.lane.b32.xlu0 %v915, 1
      %v1116 = vpop.permute.xlu0 %1115
      %1117 = vrot.lane.b32.xlu0 %v916, 1
      %v1118 = vpop.permute.xlu0 %1117
      %1119 = vrot.lane.b32.xlu0 %v917, 1
      %v1120 = vpop.permute.xlu0 %1119
      %v1121 = vsel %vm521, %v1114, %v1116
      %v1122 = vsel %vm521, %v1116, %v1118
      %v1123 = vsel %vm521, %v1118, %v1120
      %v1125 = vsel %vm929, %v1112, 0
      %v1128 = vsel %vm933, %v1121, 0
      %v1131 = vsel %vm933, %v1122, 0
      %v1134 = vsel %vm933, %v1123, 0
      %1136 = vmatpush.bf16.msra.mxu0 0
      %1137 = vmatpush.bf16.msra.mxu0 0
      %1138 = vmatpush.bf16.msra.mxu0 0
      %1139 = vmatpush.bf16.msra.mxu0 0
      %1140 = vmatpush.bf16.msra.mxu0 0
      %1141 = vmatpush.bf16.msra.mxu0 0
      %1142 = vmatpush.bf16.msra.mxu0 0
      %1143 = vmatpush.bf16.msra.mxu0 %v1128
      %1144 = vmatmul.bf16.gmra.mxu0 %v1125
      %v1145 = vpop.f32.mrf.mxu0
      %v1146 = vadd.f32 0.0, %v1145
      %v1147 = vpop.f32.mrf.mxu0
      %1148 = vdwg.mxu0
      %1149 = vmatpush.bf16.msra.mxu0 0
      %1150 = vmatpush.bf16.msra.mxu0 0
      %1151 = vmatpush.bf16.msra.mxu0 0
      %1152 = vmatpush.bf16.msra.mxu0 0
      %1153 = vmatpush.bf16.msra.mxu0 0
      %1154 = vmatpush.bf16.msra.mxu0 0
      %1155 = vmatpush.bf16.msra.mxu0 0
      %1156 = vmatpush.bf16.msra.mxu0 %v1131
      %1157 = vmatmul.bf16.gmra.mxu0 %v1125
      %v1158 = vpop.f32.mrf.mxu0
      %v1159 = vadd.f32 0.0, %v1158
      %v1160 = vpop.f32.mrf.mxu0
      %1161 = vdwg.mxu0
      %1162 = vmatpush.bf16.msra.mxu0 0
      %1163 = vmatpush.bf16.msra.mxu0 0
      %1164 = vmatpush.bf16.msra.mxu0 0
      %1165 = vmatpush.bf16.msra.mxu0 0
      %1166 = vmatpush.bf16.msra.mxu0 0
      %1167 = vmatpush.bf16.msra.mxu0 0
      %1168 = vmatpush.bf16.msra.mxu0 0
      %1169 = vmatpush.bf16.msra.mxu0 %v1134
      %1170 = vmatmul.bf16.gmra.mxu0 %v1125
      %v1171 = vpop.f32.mrf.mxu0
      %v1172 = vadd.f32 0.0, %v1171
      %v1173 = vpop.f32.mrf.mxu0
      %1174 = vdwg.mxu0
      %v1175 = vadd.f32 %v1108, %v1146
      %v1176 = vadd.f32 %v1109, %v1159
      %v1177 = vadd.f32 %v1110, %v1172
      %s1178 = scalar_lea.vmem %s4, 16
      %v1179 = vld [vmem:[%s1178] sm:$0xf]
      %v1180 = vld [vmem:[#allocation2 + $0x4] sm:$0xff]
      %v1181 = vld [vmem:[#allocation2 + $0xc] sm:$0xf]
      %v1184 = vunpack.c.l.b16 %v1180
      %v1185 = vunpack.c.h.b16 %v1180
      %v1186 = vunpack.c.l.b16 %v1181
      %v1187 = vpack.c.b16 %v1184, %v1184
      %v1188 = vpack.c.b16 %v1185, %v1185
      %v1189 = vpack.c.b16 %v1186, %v1186
      %v1191 = vsel %vm929, %v1179, 0
      %v1194 = vsel %vm933, %v1187, 0
      %v1197 = vsel %vm933, %v1188, 0
      %v1200 = vsel %vm933, %v1189, 0
      %1202 = vmatpush.bf16.msra.mxu0 0
      %1203 = vmatpush.bf16.msra.mxu0 0
      %1204 = vmatpush.bf16.msra.mxu0 0
      %1205 = vmatpush.bf16.msra.mxu0 0
      %1206 = vmatpush.bf16.msra.mxu0 0
      %1207 = vmatpush.bf16.msra.mxu0 0
      %1208 = vmatpush.bf16.msra.mxu0 0
      %1209 = vmatpush.bf16.msra.mxu0 %v1194
      %1210 = vmatmul.bf16.gmra.mxu0 %v1191
      %v1211 = vpop.f32.mrf.mxu0
      %v1212 = vadd.f32 0.0, %v1211
      %v1213 = vpop.f32.mrf.mxu0
      %1214 = vdwg.mxu0
      %1215 = vmatpush.bf16.msra.mxu0 0
      %1216 = vmatpush.bf16.msra.mxu0 0
      %1217 = vmatpush.bf16.msra.mxu0 0
      %1218 = vmatpush.bf16.msra.mxu0 0
      %1219 = vmatpush.bf16.msra.mxu0 0
      %1220 = vmatpush.bf16.msra.mxu0 0
      %1221 = vmatpush.bf16.msra.mxu0 0
      %1222 = vmatpush.bf16.msra.mxu0 %v1197
      %1223 = vmatmul.bf16.gmra.mxu0 %v1191
      %v1224 = vpop.f32.mrf.mxu0
      %v1225 = vadd.f32 0.0, %v1224
      %v1226 = vpop.f32.mrf.mxu0
      %1227 = vdwg.mxu0
      %1228 = vmatpush.bf16.msra.mxu0 0
      %1229 = vmatpush.bf16.msra.mxu0 0
      %1230 = vmatpush.bf16.msra.mxu0 0
      %1231 = vmatpush.bf16.msra.mxu0 0
      %1232 = vmatpush.bf16.msra.mxu0 0
      %1233 = vmatpush.bf16.msra.mxu0 0
      %1234 = vmatpush.bf16.msra.mxu0 0
      %1235 = vmatpush.bf16.msra.mxu0 %v1200
      %1236 = vmatmul.bf16.gmra.mxu0 %v1191
      %v1237 = vpop.f32.mrf.mxu0
      %v1238 = vadd.f32 0.0, %v1237
      %v1239 = vpop.f32.mrf.mxu0
      %1240 = vdwg.mxu0
      %v1241 = vadd.f32 %v1175, %v1212
      %v1242 = vadd.f32 %v1176, %v1225
      %v1243 = vadd.f32 %v1177, %v1238
      %s1244 = scalar_lea.vmem %s4, 20
      %v1245 = vld [vmem:[%s1244] sm:$0xf]
      %1246 = vrot.lane.b32.xlu0 %v1187, 127
      %v1247 = vpop.permute.xlu0 %1246
      %1248 = vrot.lane.b32.xlu0 %v1188, 127
      %v1249 = vpop.permute.xlu0 %1248
      %1250 = vrot.lane.b32.xlu0 %v1189, 127
      %v1251 = vpop.permute.xlu0 %1250
      %v1252 = vsel %vm648, %v1247, %v1249
      %v1253 = vsel %vm648, %v1249, %v1251
      %v1255 = vsel %vm929, %v1245, 0
      %v1258 = vsel %vm933, %v1252, 0
      %v1261 = vsel %vm933, %v1253, 0
      %v1264 = vsel %vm933, %v1251, 0
      %1266 = vmatpush.bf16.msra.mxu0 0
      %1267 = vmatpush.bf16.msra.mxu0 0
      %1268 = vmatpush.bf16.msra.mxu0 0
      %1269 = vmatpush.bf16.msra.mxu0 0
      %1270 = vmatpush.bf16.msra.mxu0 0
      %1271 = vmatpush.bf16.msra.mxu0 0
      %1272 = vmatpush.bf16.msra.mxu0 0
      %1273 = vmatpush.bf16.msra.mxu0 %v1258
      %1274 = vmatmul.bf16.gmra.mxu0 %v1255
      %v1275 = vpop.f32.mrf.mxu0
      %v1276 = vadd.f32 0.0, %v1275
      %v1277 = vpop.f32.mrf.mxu0
      %1278 = vdwg.mxu0
      %1279 = vmatpush.bf16.msra.mxu0 0
      %1280 = vmatpush.bf16.msra.mxu0 0
      %1281 = vmatpush.bf16.msra.mxu0 0
      %1282 = vmatpush.bf16.msra.mxu0 0
      %1283 = vmatpush.bf16.msra.mxu0 0
      %1284 = vmatpush.bf16.msra.mxu0 0
      %1285 = vmatpush.bf16.msra.mxu0 0
      %1286 = vmatpush.bf16.msra.mxu0 %v1261
      %1287 = vmatmul.bf16.gmra.mxu0 %v1255
      %v1288 = vpop.f32.mrf.mxu0
      %v1289 = vadd.f32 0.0, %v1288
      %v1290 = vpop.f32.mrf.mxu0
      %1291 = vdwg.mxu0
      %1292 = vmatpush.bf16.msra.mxu0 0
      %1293 = vmatpush.bf16.msra.mxu0 0
      %1294 = vmatpush.bf16.msra.mxu0 0
      %1295 = vmatpush.bf16.msra.mxu0 0
      %1296 = vmatpush.bf16.msra.mxu0 0
      %1297 = vmatpush.bf16.msra.mxu0 0
      %1298 = vmatpush.bf16.msra.mxu0 0
      %1299 = vmatpush.bf16.msra.mxu0 %v1264
      %1300 = vmatmul.bf16.gmra.mxu0 %v1255
      %v1301 = vpop.f32.mrf.mxu0
      %v1302 = vadd.f32 0.0, %v1301
      %v1303 = vpop.f32.mrf.mxu0
      %1304 = vdwg.mxu0
      %v1305 = vadd.f32 %v1241, %v1276
      %v1306 = vadd.f32 %v1242, %v1289
      %v1307 = vadd.f32 %v1243, %v1302
      %s1308 = scalar_lea.vmem %s4, 24
      %v1309 = vld [vmem:[%s1308] sm:$0xf]
      %1310 = vrot.lane.b32.xlu0 %v1187, 111
      %v1311 = vpop.permute.xlu0 %1310
      %1312 = vrot.lane.b32.xlu0 %v1188, 111
      %v1313 = vpop.permute.xlu0 %1312
      %1314 = vrot.lane.b32.xlu0 %v1189, 111
      %v1315 = vpop.permute.xlu0 %1314
      %v1316 = vsel %vm707, %v1311, %v1313
      %v1317 = vsel %vm707, %v1313, %v1315
      %v1319 = vsel %vm929, %v1309, 0
      %v1322 = vsel %vm933, %v1316, 0
      %v1325 = vsel %vm933, %v1317, 0
      %v1328 = vsel %vm933, %v1315, 0
      %1330 = vmatpush.bf16.msra.mxu0 0
      %1331 = vmatpush.bf16.msra.mxu0 0
      %1332 = vmatpush.bf16.msra.mxu0 0
      %1333 = vmatpush.bf16.msra.mxu0 0
      %1334 = vmatpush.bf16.msra.mxu0 0
      %1335 = vmatpush.bf16.msra.mxu0 0
      %1336 = vmatpush.bf16.msra.mxu0 0
      %1337 = vmatpush.bf16.msra.mxu0 %v1322
      %1338 = vmatmul.bf16.gmra.mxu0 %v1319
      %v1339 = vpop.f32.mrf.mxu0
      %v1340 = vadd.f32 0.0, %v1339
      %v1341 = vpop.f32.mrf.mxu0
      %1342 = vdwg.mxu0
      %1343 = vmatpush.bf16.msra.mxu0 0
      %1344 = vmatpush.bf16.msra.mxu0 0
      %1345 = vmatpush.bf16.msra.mxu0 0
      %1346 = vmatpush.bf16.msra.mxu0 0
      %1347 = vmatpush.bf16.msra.mxu0 0
      %1348 = vmatpush.bf16.msra.mxu0 0
      %1349 = vmatpush.bf16.msra.mxu0 0
      %1350 = vmatpush.bf16.msra.mxu0 %v1325
      %1351 = vmatmul.bf16.gmra.mxu0 %v1319
      %v1352 = vpop.f32.mrf.mxu0
      %v1353 = vadd.f32 0.0, %v1352
      %v1354 = vpop.f32.mrf.mxu0
      %1355 = vdwg.mxu0
      %1356 = vmatpush.bf16.msra.mxu0 0
      %1357 = vmatpush.bf16.msra.mxu0 0
      %1358 = vmatpush.bf16.msra.mxu0 0
      %1359 = vmatpush.bf16.msra.mxu0 0
      %1360 = vmatpush.bf16.msra.mxu0 0
      %1361 = vmatpush.bf16.msra.mxu0 0
      %1362 = vmatpush.bf16.msra.mxu0 0
      %1363 = vmatpush.bf16.msra.mxu0 %v1328
      %1364 = vmatmul.bf16.gmra.mxu0 %v1319
      %v1365 = vpop.f32.mrf.mxu0
      %v1366 = vadd.f32 0.0, %v1365
      %v1367 = vpop.f32.mrf.mxu0
      %1368 = vdwg.mxu0
      %v1369 = vadd.f32 %v1305, %v1340
      %v1370 = vadd.f32 %v1306, %v1353
      %v1371 = vadd.f32 %v1307, %v1366
      %s1372 = scalar_lea.vmem %s4, 28
      %v1373 = vld [vmem:[%s1372] sm:$0xf]
      %1374 = vrot.lane.b32.xlu0 %v1187, 110
      %v1375 = vpop.permute.xlu0 %1374
      %1376 = vrot.lane.b32.xlu0 %v1188, 110
      %v1377 = vpop.permute.xlu0 %1376
      %1378 = vrot.lane.b32.xlu0 %v1189, 110
      %v1379 = vpop.permute.xlu0 %1378
      %v1380 = vsel %vm766, %v1375, %v1377
      %v1381 = vsel %vm766, %v1377, %v1379
      %v1383 = vsel %vm929, %v1373, 0
      %v1386 = vsel %vm933, %v1380, 0
      %v1389 = vsel %vm933, %v1381, 0
      %v1392 = vsel %vm933, %v1379, 0
      %1394 = vmatpush.bf16.msra.mxu0 0
      %1395 = vmatpush.bf16.msra.mxu0 0
      %1396 = vmatpush.bf16.msra.mxu0 0
      %1397 = vmatpush.bf16.msra.mxu0 0
      %1398 = vmatpush.bf16.msra.mxu0 0
      %1399 = vmatpush.bf16.msra.mxu0 0
      %1400 = vmatpush.bf16.msra.mxu0 0
      %1401 = vmatpush.bf16.msra.mxu0 %v1386
      %1402 = vmatmul.bf16.gmra.mxu0 %v1383
      %v1403 = vpop.f32.mrf.mxu0
      %v1404 = vadd.f32 0.0, %v1403
      %v1405 = vpop.f32.mrf.mxu0
      %1406 = vdwg.mxu0
      %1407 = vmatpush.bf16.msra.mxu0 0
      %1408 = vmatpush.bf16.msra.mxu0 0
      %1409 = vmatpush.bf16.msra.mxu0 0
      %1410 = vmatpush.bf16.msra.mxu0 0
      %1411 = vmatpush.bf16.msra.mxu0 0
      %1412 = vmatpush.bf16.msra.mxu0 0
      %1413 = vmatpush.bf16.msra.mxu0 0
      %1414 = vmatpush.bf16.msra.mxu0 %v1389
      %1415 = vmatmul.bf16.gmra.mxu0 %v1383
      %v1416 = vpop.f32.mrf.mxu0
      %v1417 = vadd.f32 0.0, %v1416
      %v1418 = vpop.f32.mrf.mxu0
      %1419 = vdwg.mxu0
      %1420 = vmatpush.bf16.msra.mxu0 0
      %1421 = vmatpush.bf16.msra.mxu0 0
      %1422 = vmatpush.bf16.msra.mxu0 0
      %1423 = vmatpush.bf16.msra.mxu0 0
      %1424 = vmatpush.bf16.msra.mxu0 0
      %1425 = vmatpush.bf16.msra.mxu0 0
      %1426 = vmatpush.bf16.msra.mxu0 0
      %1427 = vmatpush.bf16.msra.mxu0 %v1392
      %1428 = vmatmul.bf16.gmra.mxu0 %v1383
      %v1429 = vpop.f32.mrf.mxu0
      %v1430 = vadd.f32 0.0, %v1429
      %v1431 = vpop.f32.mrf.mxu0
      %1432 = vdwg.mxu0
      %v1433 = vadd.f32 %v1369, %v1404
      %v1434 = vadd.f32 %v1370, %v1417
      %v1435 = vadd.f32 %v1371, %v1430
      %s1436 = scalar_lea.vmem %s4, 32
      %v1437 = vld [vmem:[%s1436] sm:$0xf]
      %1438 = vrot.lane.b32.xlu0 %v1187, 109
      %v1439 = vpop.permute.xlu0 %1438
      %1440 = vrot.lane.b32.xlu0 %v1188, 109
      %v1441 = vpop.permute.xlu0 %1440
      %1442 = vrot.lane.b32.xlu0 %v1189, 109
      %v1443 = vpop.permute.xlu0 %1442
      %v1444 = vsel %vm825, %v1439, %v1441
      %v1445 = vsel %vm825, %v1441, %v1443
      %v1447 = vsel %vm929, %v1437, 0
      %v1450 = vsel %vm933, %v1444, 0
      %v1453 = vsel %vm933, %v1445, 0
      %v1456 = vsel %vm933, %v1443, 0
      %1458 = vmatpush.bf16.msra.mxu0 0
      %1459 = vmatpush.bf16.msra.mxu0 0
      %1460 = vmatpush.bf16.msra.mxu0 0
      %1461 = vmatpush.bf16.msra.mxu0 0
      %1462 = vmatpush.bf16.msra.mxu0 0
      %1463 = vmatpush.bf16.msra.mxu0 0
      %1464 = vmatpush.bf16.msra.mxu0 0
      %1465 = vmatpush.bf16.msra.mxu0 %v1450
      %1466 = vmatmul.bf16.gmra.mxu0 %v1447
      %v1467 = vpop.f32.mrf.mxu0
      %v1468 = vadd.f32 0.0, %v1467
      %v1469 = vpop.f32.mrf.mxu0
      %1470 = vdwg.mxu0
      %1471 = vmatpush.bf16.msra.mxu0 0
      %1472 = vmatpush.bf16.msra.mxu0 0
      %1473 = vmatpush.bf16.msra.mxu0 0
      %1474 = vmatpush.bf16.msra.mxu0 0
      %1475 = vmatpush.bf16.msra.mxu0 0
      %1476 = vmatpush.bf16.msra.mxu0 0
      %1477 = vmatpush.bf16.msra.mxu0 0
      %1478 = vmatpush.bf16.msra.mxu0 %v1453
      %1479 = vmatmul.bf16.gmra.mxu0 %v1447
      %v1480 = vpop.f32.mrf.mxu0
      %v1481 = vadd.f32 0.0, %v1480
      %v1482 = vpop.f32.mrf.mxu0
      %1483 = vdwg.mxu0
      %1484 = vmatpush.bf16.msra.mxu0 0
      %1485 = vmatpush.bf16.msra.mxu0 0
      %1486 = vmatpush.bf16.msra.mxu0 0
      %1487 = vmatpush.bf16.msra.mxu0 0
      %1488 = vmatpush.bf16.msra.mxu0 0
      %1489 = vmatpush.bf16.msra.mxu0 0
      %1490 = vmatpush.bf16.msra.mxu0 0
      %1491 = vmatpush.bf16.msra.mxu0 %v1456
      %1492 = vmatmul.bf16.gmra.mxu0 %v1447
      %v1493 = vpop.f32.mrf.mxu0
      %v1494 = vadd.f32 0.0, %v1493
      %v1495 = vpop.f32.mrf.mxu0
      %1496 = vdwg.mxu0
      %v1497 = vadd.f32 %v1433, %v1468
      %v1498 = vadd.f32 %v1434, %v1481
      %v1499 = vadd.f32 %v1435, %v1494
      %v1500 = vld [vmem:[%s5] sm:$0xff]
      %1502 = vset.pattern.permute.xlu0 0
      %1503 = vperm.xlu0 %1502, %v1500
      %v1504 = vpop.permute.xlu0 %1503
      %v1506 = vadd.f32 %v1497, %v1504
      %v1507 = vadd.f32 %v1498, %v1504
      %v1508 = vadd.f32 %v1499, %v1504
      %v1509 = vmax.f32 %v1506, 0.0
      %v1510 = vmax.f32 %v1507, 0.0
      %v1511 = vmax.f32 %v1508, 0.0
      %v1512 = vmul.f32 %v1509, %v889
      %v1513 = vmul.f32 %v1510, %v890
      %v1514 = vmul.f32 %v1511, %v891
      %v1515 = vpack.c.bf16 %v1513, %v1512
      %v1516 = vpack.c.bf16 %v1514, %v1514
      %1517 = vst [vmem:[#allocation2 + $0x4] sm:$0xff] %v1515
      %1518 = vst.msk [vmem:[#allocation2 + $0xc] sm:$0xf] %vm901, %v1516
      %v1519 = vld [vmem:[%s6] sm:$0xf]
      %v1520 = vld [vmem:[#allocation2] sm:$0xff]
      %v1521 = vld [vmem:[#allocation2 + $0x8] sm:$0xff]
      %s1522 = scalar_lea.vmem %s6, 4
      %v1523 = vld [vmem:[%s1522] sm:$0xf]
      %v1526 = vunpack.c.l.b16 %v1520
      %v1527 = vunpack.c.h.b16 %v1520
      %v1528 = vunpack.c.l.b16 %v1521
      %v1529 = vunpack.c.h.b16 %v1521
      %v1530 = vpack.c.b16 %v1526, %v1526
      %v1531 = vpack.c.b16 %v1527, %v1527
      %v1532 = vpack.c.b16 %v1528, %v1528
      %v1533 = vpack.c.b16 %v1529, %v1529
      %1534 = vrot.lane.b32.xlu0 %v1530, 18
      %v1535 = vpop.permute.xlu0 %1534
      %1536 = vrot.lane.b32.xlu0 %v1531, 18
      %v1537 = vpop.permute.xlu0 %1536
      %1538 = vrot.lane.b32.xlu0 %v1532, 18
      %v1539 = vpop.permute.xlu0 %1538
      %1540 = vrot.lane.b32.xlu0 %v1533, 18
      %v1541 = vpop.permute.xlu0 %1540
      %v1542 = vsel %vm342, %v1535, %v1537
      %v1543 = vsel %vm342, %v1537, %v1539
      %v1544 = vsel %vm342, %v1539, %v1541
      %v1546 = vsel %vm929, %v1523, 0
      %v1549 = vsel %vm933, %v1542, 0
      %v1552 = vsel %vm933, %v1543, 0
      %v1555 = vsel %vm933, %v1544, 0
      %1557 = vmatpush.bf16.msra.mxu0 0
      %1558 = vmatpush.bf16.msra.mxu0 0
      %1559 = vmatpush.bf16.msra.mxu0 0
      %1560 = vmatpush.bf16.msra.mxu0 0
      %1561 = vmatpush.bf16.msra.mxu0 0
      %1562 = vmatpush.bf16.msra.mxu0 0
      %1563 = vmatpush.bf16.msra.mxu0 0
      %1564 = vmatpush.bf16.msra.mxu0 %v1549
      %1565 = vmatmul.bf16.gmra.mxu0 %v1546
      %v1566 = vpop.f32.mrf.mxu0
      %v1567 = vadd.f32 0.0, %v1566
      %v1568 = vpop.f32.mrf.mxu0
      %1569 = vdwg.mxu0
      %1570 = vmatpush.bf16.msra.mxu0 0
      %1571 = vmatpush.bf16.msra.mxu0 0
      %1572 = vmatpush.bf16.msra.mxu0 0
      %1573 = vmatpush.bf16.msra.mxu0 0
      %1574 = vmatpush.bf16.msra.mxu0 0
      %1575 = vmatpush.bf16.msra.mxu0 0
      %1576 = vmatpush.bf16.msra.mxu0 0
      %1577 = vmatpush.bf16.msra.mxu0 %v1552
      %1578 = vmatmul.bf16.gmra.mxu0 %v1546
      %v1579 = vpop.f32.mrf.mxu0
      %v1580 = vadd.f32 0.0, %v1579
      %v1581 = vpop.f32.mrf.mxu0
      %1582 = vdwg.mxu0
      %1583 = vmatpush.bf16.msra.mxu0 0
      %1584 = vmatpush.bf16.msra.mxu0 0
      %1585 = vmatpush.bf16.msra.mxu0 0
      %1586 = vmatpush.bf16.msra.mxu0 0
      %1587 = vmatpush.bf16.msra.mxu0 0
      %1588 = vmatpush.bf16.msra.mxu0 0
      %1589 = vmatpush.bf16.msra.mxu0 0
      %1590 = vmatpush.bf16.msra.mxu0 %v1555
      %1591 = vmatmul.bf16.gmra.mxu0 %v1546
      %v1592 = vpop.f32.mrf.mxu0
      %v1593 = vadd.f32 0.0, %v1592
      %v1594 = vpop.f32.mrf.mxu0
      %1595 = vdwg.mxu0
      %1596 = vrot.lane.b32.xlu0 %v1530, 19
      %v1597 = vpop.permute.xlu0 %1596
      %1598 = vrot.lane.b32.xlu0 %v1531, 19
      %v1599 = vpop.permute.xlu0 %1598
      %1600 = vrot.lane.b32.xlu0 %v1532, 19
      %v1601 = vpop.permute.xlu0 %1600
      %1602 = vrot.lane.b32.xlu0 %v1533, 19
      %v1603 = vpop.permute.xlu0 %1602
      %v1604 = vsel %vm400, %v1597, %v1599
      %v1605 = vsel %vm400, %v1599, %v1601
      %v1606 = vsel %vm400, %v1601, %v1603
      %v1608 = vsel %vm929, %v1519, 0
      %v1611 = vsel %vm933, %v1604, 0
      %v1614 = vsel %vm933, %v1605, 0
      %v1617 = vsel %vm933, %v1606, 0
      %1619 = vmatpush.bf16.msra.mxu0 0
      %1620 = vmatpush.bf16.msra.mxu0 0
      %1621 = vmatpush.bf16.msra.mxu0 0
      %1622 = vmatpush.bf16.msra.mxu0 0
      %1623 = vmatpush.bf16.msra.mxu0 0
      %1624 = vmatpush.bf16.msra.mxu0 0
      %1625 = vmatpush.bf16.msra.mxu0 0
      %1626 = vmatpush.bf16.msra.mxu0 %v1611
      %1627 = vmatmul.bf16.gmra.mxu0 %v1608
      %v1628 = vpop.f32.mrf.mxu0
      %v1629 = vadd.f32 %v1567, %v1628
      %v1630 = vpop.f32.mrf.mxu0
      %1631 = vdwg.mxu0
      %1632 = vmatpush.bf16.msra.mxu0 0
      %1633 = vmatpush.bf16.msra.mxu0 0
      %1634 = vmatpush.bf16.msra.mxu0 0
      %1635 = vmatpush.bf16.msra.mxu0 0
      %1636 = vmatpush.bf16.msra.mxu0 0
      %1637 = vmatpush.bf16.msra.mxu0 0
      %1638 = vmatpush.bf16.msra.mxu0 0
      %1639 = vmatpush.bf16.msra.mxu0 %v1614
      %1640 = vmatmul.bf16.gmra.mxu0 %v1608
      %v1641 = vpop.f32.mrf.mxu0
      %v1642 = vadd.f32 %v1580, %v1641
      %v1643 = vpop.f32.mrf.mxu0
      %1644 = vdwg.mxu0
      %1645 = vmatpush.bf16.msra.mxu0 0
      %1646 = vmatpush.bf16.msra.mxu0 0
      %1647 = vmatpush.bf16.msra.mxu0 0
      %1648 = vmatpush.bf16.msra.mxu0 0
      %1649 = vmatpush.bf16.msra.mxu0 0
      %1650 = vmatpush.bf16.msra.mxu0 0
      %1651 = vmatpush.bf16.msra.mxu0 0
      %1652 = vmatpush.bf16.msra.mxu0 %v1617
      %1653 = vmatmul.bf16.gmra.mxu0 %v1608
      %v1654 = vpop.f32.mrf.mxu0
      %v1655 = vadd.f32 %v1593, %v1654
      %v1656 = vpop.f32.mrf.mxu0
      %1657 = vdwg.mxu0
      %s1658 = scalar_lea.vmem %s6, 8
      %v1659 = vld [vmem:[%s1658] sm:$0xf]
      %1660 = vrot.lane.b32.xlu0 %v1530, 17
      %v1661 = vpop.permute.xlu0 %1660
      %1662 = vrot.lane.b32.xlu0 %v1531, 17
      %v1663 = vpop.permute.xlu0 %1662
      %1664 = vrot.lane.b32.xlu0 %v1532, 17
      %v1665 = vpop.permute.xlu0 %1664
      %1666 = vrot.lane.b32.xlu0 %v1533, 17
      %v1667 = vpop.permute.xlu0 %1666
      %v1668 = vsel %vm459, %v1661, %v1663
      %v1669 = vsel %vm459, %v1663, %v1665
      %v1670 = vsel %vm459, %v1665, %v1667
      %v1672 = vsel %vm929, %v1659, 0
      %v1675 = vsel %vm933, %v1668, 0
      %v1678 = vsel %vm933, %v1669, 0
      %v1681 = vsel %vm933, %v1670, 0
      %1683 = vmatpush.bf16.msra.mxu0 0
      %1684 = vmatpush.bf16.msra.mxu0 0
      %1685 = vmatpush.bf16.msra.mxu0 0
      %1686 = vmatpush.bf16.msra.mxu0 0
      %1687 = vmatpush.bf16.msra.mxu0 0
      %1688 = vmatpush.bf16.msra.mxu0 0
      %1689 = vmatpush.bf16.msra.mxu0 0
      %1690 = vmatpush.bf16.msra.mxu0 %v1675
      %1691 = vmatmul.bf16.gmra.mxu0 %v1672
      %v1692 = vpop.f32.mrf.mxu0
      %v1693 = vadd.f32 0.0, %v1692
      %v1694 = vpop.f32.mrf.mxu0
      %1695 = vdwg.mxu0
      %1696 = vmatpush.bf16.msra.mxu0 0
      %1697 = vmatpush.bf16.msra.mxu0 0
      %1698 = vmatpush.bf16.msra.mxu0 0
      %1699 = vmatpush.bf16.msra.mxu0 0
      %1700 = vmatpush.bf16.msra.mxu0 0
      %1701 = vmatpush.bf16.msra.mxu0 0
      %1702 = vmatpush.bf16.msra.mxu0 0
      %1703 = vmatpush.bf16.msra.mxu0 %v1678
      %1704 = vmatmul.bf16.gmra.mxu0 %v1672
      %v1705 = vpop.f32.mrf.mxu0
      %v1706 = vadd.f32 0.0, %v1705
      %v1707 = vpop.f32.mrf.mxu0
      %1708 = vdwg.mxu0
      %1709 = vmatpush.bf16.msra.mxu0 0
      %1710 = vmatpush.bf16.msra.mxu0 0
      %1711 = vmatpush.bf16.msra.mxu0 0
      %1712 = vmatpush.bf16.msra.mxu0 0
      %1713 = vmatpush.bf16.msra.mxu0 0
      %1714 = vmatpush.bf16.msra.mxu0 0
      %1715 = vmatpush.bf16.msra.mxu0 0
      %1716 = vmatpush.bf16.msra.mxu0 %v1681
      %1717 = vmatmul.bf16.gmra.mxu0 %v1672
      %v1718 = vpop.f32.mrf.mxu0
      %v1719 = vadd.f32 0.0, %v1718
      %v1720 = vpop.f32.mrf.mxu0
      %1721 = vdwg.mxu0
      %v1722 = vadd.f32 %v1629, %v1693
      %v1723 = vadd.f32 %v1642, %v1706
      %v1724 = vadd.f32 %v1655, %v1719
      %s1725 = scalar_lea.vmem %s6, 12
      %v1726 = vld [vmem:[%s1725] sm:$0xf]
      %1727 = vrot.lane.b32.xlu0 %v1530, 1
      %v1728 = vpop.permute.xlu0 %1727
      %1729 = vrot.lane.b32.xlu0 %v1531, 1
      %v1730 = vpop.permute.xlu0 %1729
      %1731 = vrot.lane.b32.xlu0 %v1532, 1
      %v1732 = vpop.permute.xlu0 %1731
      %1733 = vrot.lane.b32.xlu0 %v1533, 1
      %v1734 = vpop.permute.xlu0 %1733
      %v1735 = vsel %vm521, %v1728, %v1730
      %v1736 = vsel %vm521, %v1730, %v1732
      %v1737 = vsel %vm521, %v1732, %v1734
      %v1739 = vsel %vm929, %v1726, 0
      %v1742 = vsel %vm933, %v1735, 0
      %v1745 = vsel %vm933, %v1736, 0
      %v1748 = vsel %vm933, %v1737, 0
      %1750 = vmatpush.bf16.msra.mxu0 0
      %1751 = vmatpush.bf16.msra.mxu0 0
      %1752 = vmatpush.bf16.msra.mxu0 0
      %1753 = vmatpush.bf16.msra.mxu0 0
      %1754 = vmatpush.bf16.msra.mxu0 0
      %1755 = vmatpush.bf16.msra.mxu0 0
      %1756 = vmatpush.bf16.msra.mxu0 0
      %1757 = vmatpush.bf16.msra.mxu0 %v1742
      %1758 = vmatmul.bf16.gmra.mxu0 %v1739
      %v1759 = vpop.f32.mrf.mxu0
      %v1760 = vadd.f32 0.0, %v1759
      %v1761 = vpop.f32.mrf.mxu0
      %1762 = vdwg.mxu0
      %1763 = vmatpush.bf16.msra.mxu0 0
      %1764 = vmatpush.bf16.msra.mxu0 0
      %1765 = vmatpush.bf16.msra.mxu0 0
      %1766 = vmatpush.bf16.msra.mxu0 0
      %1767 = vmatpush.bf16.msra.mxu0 0
      %1768 = vmatpush.bf16.msra.mxu0 0
      %1769 = vmatpush.bf16.msra.mxu0 0
      %1770 = vmatpush.bf16.msra.mxu0 %v1745
      %1771 = vmatmul.bf16.gmra.mxu0 %v1739
      %v1772 = vpop.f32.mrf.mxu0
      %v1773 = vadd.f32 0.0, %v1772
      %v1774 = vpop.f32.mrf.mxu0
      %1775 = vdwg.mxu0
      %1776 = vmatpush.bf16.msra.mxu0 0
      %1777 = vmatpush.bf16.msra.mxu0 0
      %1778 = vmatpush.bf16.msra.mxu0 0
      %1779 = vmatpush.bf16.msra.mxu0 0
      %1780 = vmatpush.bf16.msra.mxu0 0
      %1781 = vmatpush.bf16.msra.mxu0 0
      %1782 = vmatpush.bf16.msra.mxu0 0
      %1783 = vmatpush.bf16.msra.mxu0 %v1748
      %1784 = vmatmul.bf16.gmra.mxu0 %v1739
      %v1785 = vpop.f32.mrf.mxu0
      %v1786 = vadd.f32 0.0, %v1785
      %v1787 = vpop.f32.mrf.mxu0
      %1788 = vdwg.mxu0
      %v1789 = vadd.f32 %v1722, %v1760
      %v1790 = vadd.f32 %v1723, %v1773
      %v1791 = vadd.f32 %v1724, %v1786
      %s1792 = scalar_lea.vmem %s6, 16
      %v1793 = vld [vmem:[%s1792] sm:$0xf]
      %v1794 = vld [vmem:[#allocation2 + $0x4] sm:$0xff]
      %v1795 = vld [vmem:[#allocation2 + $0xc] sm:$0xf]
      %v1798 = vunpack.c.l.b16 %v1794
      %v1799 = vunpack.c.h.b16 %v1794
      %v1800 = vunpack.c.l.b16 %v1795
      %v1801 = vpack.c.b16 %v1798, %v1798
      %v1802 = vpack.c.b16 %v1799, %v1799
      %v1803 = vpack.c.b16 %v1800, %v1800
      %v1805 = vsel %vm929, %v1793, 0
      %v1808 = vsel %vm933, %v1801, 0
      %v1811 = vsel %vm933, %v1802, 0
      %v1814 = vsel %vm933, %v1803, 0
      %1816 = vmatpush.bf16.msra.mxu0 0
      %1817 = vmatpush.bf16.msra.mxu0 0
      %1818 = vmatpush.bf16.msra.mxu0 0
      %1819 = vmatpush.bf16.msra.mxu0 0
      %1820 = vmatpush.bf16.msra.mxu0 0
      %1821 = vmatpush.bf16.msra.mxu0 0
      %1822 = vmatpush.bf16.msra.mxu0 0
      %1823 = vmatpush.bf16.msra.mxu0 %v1808
      %1824 = vmatmul.bf16.gmra.mxu0 %v1805
      %v1825 = vpop.f32.mrf.mxu0
      %v1826 = vadd.f32 0.0, %v1825
      %v1827 = vpop.f32.mrf.mxu0
      %1828 = vdwg.mxu0
      %1829 = vmatpush.bf16.msra.mxu0 0
      %1830 = vmatpush.bf16.msra.mxu0 0
      %1831 = vmatpush.bf16.msra.mxu0 0
      %1832 = vmatpush.bf16.msra.mxu0 0
      %1833 = vmatpush.bf16.msra.mxu0 0
      %1834 = vmatpush.bf16.msra.mxu0 0
      %1835 = vmatpush.bf16.msra.mxu0 0
      %1836 = vmatpush.bf16.msra.mxu0 %v1811
      %1837 = vmatmul.bf16.gmra.mxu0 %v1805
      %v1838 = vpop.f32.mrf.mxu0
      %v1839 = vadd.f32 0.0, %v1838
      %v1840 = vpop.f32.mrf.mxu0
      %1841 = vdwg.mxu0
      %1842 = vmatpush.bf16.msra.mxu0 0
      %1843 = vmatpush.bf16.msra.mxu0 0
      %1844 = vmatpush.bf16.msra.mxu0 0
      %1845 = vmatpush.bf16.msra.mxu0 0
      %1846 = vmatpush.bf16.msra.mxu0 0
      %1847 = vmatpush.bf16.msra.mxu0 0
      %1848 = vmatpush.bf16.msra.mxu0 0
      %1849 = vmatpush.bf16.msra.mxu0 %v1814
      %1850 = vmatmul.bf16.gmra.mxu0 %v1805
      %v1851 = vpop.f32.mrf.mxu0
      %v1852 = vadd.f32 0.0, %v1851
      %v1853 = vpop.f32.mrf.mxu0
      %1854 = vdwg.mxu0
      %v1855 = vadd.f32 %v1789, %v1826
      %v1856 = vadd.f32 %v1790, %v1839
      %v1857 = vadd.f32 %v1791, %v1852
      %s1858 = scalar_lea.vmem %s6, 20
      %v1859 = vld [vmem:[%s1858] sm:$0xf]
      %1860 = vrot.lane.b32.xlu0 %v1801, 127
      %v1861 = vpop.permute.xlu0 %1860
      %1862 = vrot.lane.b32.xlu0 %v1802, 127
      %v1863 = vpop.permute.xlu0 %1862
      %1864 = vrot.lane.b32.xlu0 %v1803, 127
      %v1865 = vpop.permute.xlu0 %1864
      %v1866 = vsel %vm648, %v1861, %v1863
      %v1867 = vsel %vm648, %v1863, %v1865
      %v1869 = vsel %vm929, %v1859, 0
      %v1872 = vsel %vm933, %v1866, 0
      %v1875 = vsel %vm933, %v1867, 0
      %v1878 = vsel %vm933, %v1865, 0
      %1880 = vmatpush.bf16.msra.mxu0 0
      %1881 = vmatpush.bf16.msra.mxu0 0
      %1882 = vmatpush.bf16.msra.mxu0 0
      %1883 = vmatpush.bf16.msra.mxu0 0
      %1884 = vmatpush.bf16.msra.mxu0 0
      %1885 = vmatpush.bf16.msra.mxu0 0
      %1886 = vmatpush.bf16.msra.mxu0 0
      %1887 = vmatpush.bf16.msra.mxu0 %v1872
      %1888 = vmatmul.bf16.gmra.mxu0 %v1869
      %v1889 = vpop.f32.mrf.mxu0
      %v1890 = vadd.f32 0.0, %v1889
      %v1891 = vpop.f32.mrf.mxu0
      %1892 = vdwg.mxu0
      %1893 = vmatpush.bf16.msra.mxu0 0
      %1894 = vmatpush.bf16.msra.mxu0 0
      %1895 = vmatpush.bf16.msra.mxu0 0
      %1896 = vmatpush.bf16.msra.mxu0 0
      %1897 = vmatpush.bf16.msra.mxu0 0
      %1898 = vmatpush.bf16.msra.mxu0 0
      %1899 = vmatpush.bf16.msra.mxu0 0
      %1900 = vmatpush.bf16.msra.mxu0 %v1875
      %1901 = vmatmul.bf16.gmra.mxu0 %v1869
      %v1902 = vpop.f32.mrf.mxu0
      %v1903 = vadd.f32 0.0, %v1902
      %v1904 = vpop.f32.mrf.mxu0
      %1905 = vdwg.mxu0
      %1906 = vmatpush.bf16.msra.mxu0 0
      %1907 = vmatpush.bf16.msra.mxu0 0
      %1908 = vmatpush.bf16.msra.mxu0 0
      %1909 = vmatpush.bf16.msra.mxu0 0
      %1910 = vmatpush.bf16.msra.mxu0 0
      %1911 = vmatpush.bf16.msra.mxu0 0
      %1912 = vmatpush.bf16.msra.mxu0 0
      %1913 = vmatpush.bf16.msra.mxu0 %v1878
      %1914 = vmatmul.bf16.gmra.mxu0 %v1869
      %v1915 = vpop.f32.mrf.mxu0
      %v1916 = vadd.f32 0.0, %v1915
      %v1917 = vpop.f32.mrf.mxu0
      %1918 = vdwg.mxu0
      %v1919 = vadd.f32 %v1855, %v1890
      %v1920 = vadd.f32 %v1856, %v1903
      %v1921 = vadd.f32 %v1857, %v1916
      %s1922 = scalar_lea.vmem %s6, 24
      %v1923 = vld [vmem:[%s1922] sm:$0xf]
      %1924 = vrot.lane.b32.xlu0 %v1801, 111
      %v1925 = vpop.permute.xlu0 %1924
      %1926 = vrot.lane.b32.xlu0 %v1802, 111
      %v1927 = vpop.permute.xlu0 %1926
      %1928 = vrot.lane.b32.xlu0 %v1803, 111
      %v1929 = vpop.permute.xlu0 %1928
      %v1930 = vsel %vm707, %v1925, %v1927
      %v1931 = vsel %vm707, %v1927, %v1929
      %v1933 = vsel %vm929, %v1923, 0
      %v1936 = vsel %vm933, %v1930, 0
      %v1939 = vsel %vm933, %v1931, 0
      %v1942 = vsel %vm933, %v1929, 0
      %1944 = vmatpush.bf16.msra.mxu0 0
      %1945 = vmatpush.bf16.msra.mxu0 0
      %1946 = vmatpush.bf16.msra.mxu0 0
      %1947 = vmatpush.bf16.msra.mxu0 0
      %1948 = vmatpush.bf16.msra.mxu0 0
      %1949 = vmatpush.bf16.msra.mxu0 0
      %1950 = vmatpush.bf16.msra.mxu0 0
      %1951 = vmatpush.bf16.msra.mxu0 %v1936
      %1952 = vmatmul.bf16.gmra.mxu0 %v1933
      %v1953 = vpop.f32.mrf.mxu0
      %v1954 = vadd.f32 0.0, %v1953
      %v1955 = vpop.f32.mrf.mxu0
      %1956 = vdwg.mxu0
      %1957 = vmatpush.bf16.msra.mxu0 0
      %1958 = vmatpush.bf16.msra.mxu0 0
      %1959 = vmatpush.bf16.msra.mxu0 0
      %1960 = vmatpush.bf16.msra.mxu0 0
      %1961 = vmatpush.bf16.msra.mxu0 0
      %1962 = vmatpush.bf16.msra.mxu0 0
      %1963 = vmatpush.bf16.msra.mxu0 0
      %1964 = vmatpush.bf16.msra.mxu0 %v1939
      %1965 = vmatmul.bf16.gmra.mxu0 %v1933
      %v1966 = vpop.f32.mrf.mxu0
      %v1967 = vadd.f32 0.0, %v1966
      %v1968 = vpop.f32.mrf.mxu0
      %1969 = vdwg.mxu0
      %1970 = vmatpush.bf16.msra.mxu0 0
      %1971 = vmatpush.bf16.msra.mxu0 0
      %1972 = vmatpush.bf16.msra.mxu0 0
      %1973 = vmatpush.bf16.msra.mxu0 0
      %1974 = vmatpush.bf16.msra.mxu0 0
      %1975 = vmatpush.bf16.msra.mxu0 0
      %1976 = vmatpush.bf16.msra.mxu0 0
      %1977 = vmatpush.bf16.msra.mxu0 %v1942
      %1978 = vmatmul.bf16.gmra.mxu0 %v1933
      %v1979 = vpop.f32.mrf.mxu0
      %v1980 = vadd.f32 0.0, %v1979
      %v1981 = vpop.f32.mrf.mxu0
      %1982 = vdwg.mxu0
      %v1983 = vadd.f32 %v1919, %v1954
      %v1984 = vadd.f32 %v1920, %v1967
      %v1985 = vadd.f32 %v1921, %v1980
      %s1986 = scalar_lea.vmem %s6, 28
      %v1987 = vld [vmem:[%s1986] sm:$0xf]
      %1988 = vrot.lane.b32.xlu0 %v1801, 110
      %v1989 = vpop.permute.xlu0 %1988
      %1990 = vrot.lane.b32.xlu0 %v1802, 110
      %v1991 = vpop.permute.xlu0 %1990
      %1992 = vrot.lane.b32.xlu0 %v1803, 110
      %v1993 = vpop.permute.xlu0 %1992
      %v1994 = vsel %vm766, %v1989, %v1991
      %v1995 = vsel %vm766, %v1991, %v1993
      %v1997 = vsel %vm929, %v1987, 0
      %v2000 = vsel %vm933, %v1994, 0
      %v2003 = vsel %vm933, %v1995, 0
      %v2006 = vsel %vm933, %v1993, 0
      %2008 = vmatpush.bf16.msra.mxu0 0
      %2009 = vmatpush.bf16.msra.mxu0 0
      %2010 = vmatpush.bf16.msra.mxu0 0
      %2011 = vmatpush.bf16.msra.mxu0 0
      %2012 = vmatpush.bf16.msra.mxu0 0
      %2013 = vmatpush.bf16.msra.mxu0 0
      %2014 = vmatpush.bf16.msra.mxu0 0
      %2015 = vmatpush.bf16.msra.mxu0 %v2000
      %2016 = vmatmul.bf16.gmra.mxu0 %v1997
      %v2017 = vpop.f32.mrf.mxu0
      %v2018 = vadd.f32 0.0, %v2017
      %v2019 = vpop.f32.mrf.mxu0
      %2020 = vdwg.mxu0
      %2021 = vmatpush.bf16.msra.mxu0 0
      %2022 = vmatpush.bf16.msra.mxu0 0
      %2023 = vmatpush.bf16.msra.mxu0 0
      %2024 = vmatpush.bf16.msra.mxu0 0
      %2025 = vmatpush.bf16.msra.mxu0 0
      %2026 = vmatpush.bf16.msra.mxu0 0
      %2027 = vmatpush.bf16.msra.mxu0 0
      %2028 = vmatpush.bf16.msra.mxu0 %v2003
      %2029 = vmatmul.bf16.gmra.mxu0 %v1997
      %v2030 = vpop.f32.mrf.mxu0
      %v2031 = vadd.f32 0.0, %v2030
      %v2032 = vpop.f32.mrf.mxu0
      %2033 = vdwg.mxu0
      %2034 = vmatpush.bf16.msra.mxu0 0
      %2035 = vmatpush.bf16.msra.mxu0 0
      %2036 = vmatpush.bf16.msra.mxu0 0
      %2037 = vmatpush.bf16.msra.mxu0 0
      %2038 = vmatpush.bf16.msra.mxu0 0
      %2039 = vmatpush.bf16.msra.mxu0 0
      %2040 = vmatpush.bf16.msra.mxu0 0
      %2041 = vmatpush.bf16.msra.mxu0 %v2006
      %2042 = vmatmul.bf16.gmra.mxu0 %v1997
      %v2043 = vpop.f32.mrf.mxu0
      %v2044 = vadd.f32 0.0, %v2043
      %v2045 = vpop.f32.mrf.mxu0
      %2046 = vdwg.mxu0
      %v2047 = vadd.f32 %v1983, %v2018
      %v2048 = vadd.f32 %v1984, %v2031
      %v2049 = vadd.f32 %v1985, %v2044
      %s2050 = scalar_lea.vmem %s6, 32
      %v2051 = vld [vmem:[%s2050] sm:$0xf]
      %2052 = vrot.lane.b32.xlu0 %v1801, 109
      %v2053 = vpop.permute.xlu0 %2052
      %2054 = vrot.lane.b32.xlu0 %v1802, 109
      %v2055 = vpop.permute.xlu0 %2054
      %2056 = vrot.lane.b32.xlu0 %v1803, 109
      %v2057 = vpop.permute.xlu0 %2056
      %v2058 = vsel %vm825, %v2053, %v2055
      %v2059 = vsel %vm825, %v2055, %v2057
      %v2061 = vsel %vm929, %v2051, 0
      %v2064 = vsel %vm933, %v2058, 0
      %v2067 = vsel %vm933, %v2059, 0
      %v2070 = vsel %vm933, %v2057, 0
      %2072 = vmatpush.bf16.msra.mxu0 0
      %2073 = vmatpush.bf16.msra.mxu0 0
      %2074 = vmatpush.bf16.msra.mxu0 0
      %2075 = vmatpush.bf16.msra.mxu0 0
      %2076 = vmatpush.bf16.msra.mxu0 0
      %2077 = vmatpush.bf16.msra.mxu0 0
      %2078 = vmatpush.bf16.msra.mxu0 0
      %2079 = vmatpush.bf16.msra.mxu0 %v2064
      %2080 = vmatmul.bf16.gmra.mxu0 %v2061
      %v2081 = vpop.f32.mrf.mxu0
      %v2082 = vadd.f32 0.0, %v2081
      %v2083 = vpop.f32.mrf.mxu0
      %2084 = vdwg.mxu0
      %2085 = vmatpush.bf16.msra.mxu0 0
      %2086 = vmatpush.bf16.msra.mxu0 0
      %2087 = vmatpush.bf16.msra.mxu0 0
      %2088 = vmatpush.bf16.msra.mxu0 0
      %2089 = vmatpush.bf16.msra.mxu0 0
      %2090 = vmatpush.bf16.msra.mxu0 0
      %2091 = vmatpush.bf16.msra.mxu0 0
      %2092 = vmatpush.bf16.msra.mxu0 %v2067
      %2093 = vmatmul.bf16.gmra.mxu0 %v2061
      %v2094 = vpop.f32.mrf.mxu0
      %v2095 = vadd.f32 0.0, %v2094
      %v2096 = vpop.f32.mrf.mxu0
      %2097 = vdwg.mxu0
      %2098 = vmatpush.bf16.msra.mxu0 0
      %2099 = vmatpush.bf16.msra.mxu0 0
      %2100 = vmatpush.bf16.msra.mxu0 0
      %2101 = vmatpush.bf16.msra.mxu0 0
      %2102 = vmatpush.bf16.msra.mxu0 0
      %2103 = vmatpush.bf16.msra.mxu0 0
      %2104 = vmatpush.bf16.msra.mxu0 0
      %2105 = vmatpush.bf16.msra.mxu0 %v2070
      %2106 = vmatmul.bf16.gmra.mxu0 %v2061
      %v2107 = vpop.f32.mrf.mxu0
      %v2108 = vadd.f32 0.0, %v2107
      %v2109 = vpop.f32.mrf.mxu0
      %2110 = vdwg.mxu0
      %v2111 = vadd.f32 %v2047, %v2082
      %v2112 = vadd.f32 %v2048, %v2095
      %v2113 = vadd.f32 %v2049, %v2108
      %v2114 = vld [vmem:[%s7] sm:$0xff]
      %2116 = vset.pattern.permute.xlu0 0
      %2117 = vperm.xlu0 %2116, %v2114
      %v2118 = vpop.permute.xlu0 %2117
      %v2120 = vadd.f32 %v2111, %v2118
      %v2121 = vadd.f32 %v2112, %v2118
      %v2122 = vadd.f32 %v2113, %v2118
      %v2123 = vmax.f32 %v2120, 0.0
      %v2124 = vmax.f32 %v2121, 0.0
      %v2125 = vmax.f32 %v2122, 0.0
      %2126 = vst.msk [vmem:[%s305] sm:$0xff] %vm349, %v2123
      %2128 = vrot.lane.b32.xlu0 %v2123, 126
      %v2129 = vpop.permute.xlu0 %2128
      %vm2131 = vcmask 261248
      %2132 = vst.msk [vmem:[%s305] sm:$0xff] %vm2131, %v2129
      %2133 = vrot.lane.b32.xlu0 %v2123, 124
      %v2134 = vpop.permute.xlu0 %2133
      %vm2136 = vcmask 392448
      %2137 = vst.msk [vmem:[%s305] sm:$0xff] %vm2136, %v2134
      %2138 = vrot.lane.b32.xlu0 %v2123, 122
      %v2139 = vpop.permute.xlu0 %2138
      %vm2141 = vcmask 523648
      %2142 = vst.msk [vmem:[%s305] sm:$0xff] %vm2141, %v2139
      %2143 = vrot.lane.b32.xlu0 %v2123, 120
      %v2144 = vpop.permute.xlu0 %2143
      %vm2146 = vcmask 654848
      %2147 = vst.msk [vmem:[%s305] sm:$0xff] %vm2146, %v2144
      %2148 = vrot.lane.b32.xlu0 %v2123, 118
      %v2149 = vpop.permute.xlu0 %2148
      %vm2151 = vcmask 786048
      %2152 = vst.msk [vmem:[%s305] sm:$0xff] %vm2151, %v2149
      %2153 = vrot.lane.b32.xlu0 %v2123, 116
      %v2154 = vpop.permute.xlu0 %2153
      %vm2156 = vcmask 917248
      %2157 = vst.msk [vmem:[%s305] sm:$0xff] %vm2156, %v2154
      %2159 = vrot.lane.b32.xlu0 %v2123, 114
      %v2160 = vpop.permute.xlu0 %2159
      %2161 = vrot.lane.b32.xlu0 %v2124, 114
      %v2162 = vpop.permute.xlu0 %2161
      %vm2163 = vcmask 932864
      %v2164 = vsel %vm2163, %v2160, %v2162
      %vm2166 = vcmask 1048448
      %2167 = vst.msk [vmem:[%s305] sm:$0xff] %vm2166, %v2164
      %2168 = vrot.lane.b32.xlu0 %v2124, 112
      %v2169 = vpop.permute.xlu0 %2168
      %2171 = vst.msk [vmem:[%s305 + $0x8] sm:$0xff] %vm349, %v2169
      %2172 = vrot.lane.b32.xlu0 %v2124, 110
      %v2173 = vpop.permute.xlu0 %2172
      %2175 = vst.msk [vmem:[%s305 + $0x8] sm:$0xff] %vm2131, %v2173
      %2176 = vrot.lane.b32.xlu0 %v2124, 108
      %v2177 = vpop.permute.xlu0 %2176
      %2179 = vst.msk [vmem:[%s305 + $0x8] sm:$0xff] %vm2136, %v2177
      %2180 = vrot.lane.b32.xlu0 %v2124, 106
      %v2181 = vpop.permute.xlu0 %2180
      %2183 = vst.msk [vmem:[%s305 + $0x8] sm:$0xff] %vm2141, %v2181
      %2184 = vrot.lane.b32.xlu0 %v2124, 104
      %v2185 = vpop.permute.xlu0 %2184
      %2187 = vst.msk [vmem:[%s305 + $0x8] sm:$0xff] %vm2146, %v2185
      %2188 = vrot.lane.b32.xlu0 %v2124, 102
      %v2189 = vpop.permute.xlu0 %2188
      %2191 = vst.msk [vmem:[%s305 + $0x8] sm:$0xff] %vm2151, %v2189
      %2193 = vrot.lane.b32.xlu0 %v2124, 100
      %v2194 = vpop.permute.xlu0 %2193
      %2195 = vrot.lane.b32.xlu0 %v2125, 100
      %v2196 = vpop.permute.xlu0 %2195
      %vm2197 = vcmask 818176
      %v2198 = vsel %vm2197, %v2194, %v2196
      %2200 = vst.msk [vmem:[%s305 + $0x8] sm:$0xff] %vm2156, %v2198
      %2201 = vrot.lane.b32.xlu0 %v2125, 98
      %v2202 = vpop.permute.xlu0 %2201
      %2204 = vst.msk [vmem:[%s305 + $0x8] sm:$0xff] %vm2166, %v2202
      %p2205 = scmp.lt.s32.totalorder %s19, 1
      %s2206 = scalar_select %p2205, %s19, 1
      %s2207 = smul.addr %s2206, 2
      %s2208 = smul.addr %s2207, 8
      %s2209 = scalar_lea.vmem %s8, %s2208
      // Predicated region
      $region53: #{_decoder_block_apply.1} parent=51 // pred_check
        %p2210 = pneg %p210
      $region54: #{_decoder_block_apply.1} parent=51 // pred_check_branch
        %2212 = sbr.rel (%p2210) target = $region56
      $region55: #{_decoder_block_apply.1} parent=51 // pred_region
        _
      $region56: #{_decoder_block_apply.1} parent=51 // pred_fallthru
        _
    $region52: #{_decoder_block_apply.1} parent=5 // pred_fallthru
      _
    %p2213 = scmp.le.s32.totalorder 2, %s14
    // Predicated region
    $region57: #{_decoder_block_apply.1} parent=5 // pred_check
      %p2214 = pneg %p2213
    $region58: #{_decoder_block_apply.1} parent=5 // pred_check_branch
      %2216 = sbr.rel (%p2214) target = $region60
    $region59: #{_decoder_block_apply.1} parent=5 // pred_region
      %s2217 = ssub.s32 %s14, 2
      // Predicated region
      $region61: #{_decoder_block_apply.1} parent=59 // pred_check
        %p2218 = pneg %p216
      $region62: #{_decoder_block_apply.1} parent=59 // pred_check_branch
        %2220 = sbr.rel (%p2218) target = $region64
      $region63: #{_decoder_block_apply.1} parent=59 // pred_region
        %p2221 = scmp.lt.s32.totalorder %s20, 1
        %s2222 = scalar_select %p2221, %s20, 1
        %s2223 = smul.addr %s2222, 2
        %s2224 = smul.addr %s2223, 8
        %s2225 = scalar_lea.vmem %s8, %s2224
      $region64: #{_decoder_block_apply.1} parent=59 // pred_fallthru
        _
    $region60: #{_decoder_block_apply.1} parent=5 // pred_fallthru
      _
  $region6: #{_decoder_block_apply.1} parent=0 // loop_footer
    %s18 = sadd.s32 1, %s14
  $region7: #{_decoder_block_apply.1} parent=0 // loop_footer_branch
    %13 = sbr.rel target = $region3
  $region8: #{_decoder_block_apply.1} parent=0 // loop_exit
    _

</llo_original>
